<compile_context>
chip_gen: v5e
topology: v5e:2x2
jax: 0.10.0
libtpu: 0.0.40
codegen_flags: <defaults>
</compile_context>

<pallas_src>
import jax
import jax.numpy as jnp
from jax.experimental import pallas as pl
from jax.experimental.pallas import tpu as pltpu

HIDDEN = 256


def _round_up(x, m):
    return ((x + m - 1) // m) * m


def _critic_kernel(s_ref, a_ref,
                   w1s_ref, w1a_ref, b14_ref,
                   w2_ref, b2_ref, w5_ref, b5_ref,
                   w3_ref, w6_ref, b36_ref,
                   q_ref):
    # Fused first layers of BOTH branches (shared input sa), no in-kernel concat:
    #   sa @ [w1.T | w4.T]  ==  state @ W_s + action @ W_a            -> (TB, 512)
    h12 = (jnp.dot(s_ref[...], w1s_ref[...], preferred_element_type=jnp.float32)
           + jnp.dot(a_ref[...], w1a_ref[...], preferred_element_type=jnp.float32)
           + b14_ref[...])
    h12 = jnp.maximum(h12, 0.0).astype(jnp.bfloat16)

    h = h12[:, :HIDDEN]       # Q1 hidden (slice at 256 is 128-lane aligned)
    g = h12[:, HIDDEN:]       # Q2 hidden

    h2 = jnp.dot(h, w2_ref[...], preferred_element_type=jnp.float32) + b2_ref[...]
    h2 = jnp.maximum(h2, 0.0).astype(jnp.bfloat16)
    g2 = jnp.dot(g, w5_ref[...], preferred_element_type=jnp.float32) + b5_ref[...]
    g2 = jnp.maximum(g2, 0.0).astype(jnp.bfloat16)

    # Fused heads: each (256, 2) weight has one zero column, so the sum gives
    # [q1, q2] in a single (TB, 2) output tile (one writeback).
    q_ref[...] = (jnp.dot(h2, w3_ref[...], preferred_element_type=jnp.float32)
                  + jnp.dot(g2, w6_ref[...], preferred_element_type=jnp.float32)
                  + b36_ref[...])


def prepare_critic_params(params, state_dim):
    """One-time repack of PyTorch-layout (out, in) params into kernel layout.

    Call this once (outside the per-step path): all transposes, branch fusion
    and bf16 casts happen here, never per forward call.
    """
    f32, bf16 = jnp.float32, jnp.bfloat16

    w1t = jnp.asarray(params["w1"], f32).T        # (Din, 256)
    w4t = jnp.asarray(params["w4"], f32).T        # (Din, 256)
    # Split state-rows / action-rows so the wrapper never concatenates sa.
    w1s = jnp.concatenate([w1t[:state_dim], w4t[:state_dim]], axis=1).astype(bf16)  # (S, 512)
    w1a = jnp.concatenate([w1t[state_dim:], w4t[state_dim:]], axis=1).astype(bf16)  # (A, 512)
    b14 = jnp.concatenate([jnp.asarray(params["b1"], f32),
                           jnp.asarray(params["b4"], f32)]).reshape(1, 2 * HIDDEN)

    w2 = jnp.asarray(params["w2"], f32).T.astype(bf16)            # (256, 256)
    w5 = jnp.asarray(params["w5"], f32).T.astype(bf16)            # (256, 256)
    b2 = jnp.asarray(params["b2"], f32).reshape(1, HIDDEN)
    b5 = jnp.asarray(params["b5"], f32).reshape(1, HIDDEN)

    zeros = jnp.zeros((HIDDEN, 1), f32)
    w3 = jnp.concatenate([jnp.asarray(params["w3"], f32).T, zeros], axis=1).astype(bf16)  # (256, 2)
    w6 = jnp.concatenate([zeros, jnp.asarray(params["w6"], f32).T], axis=1).astype(bf16)  # (256, 2)
    b36 = jnp.concatenate([jnp.asarray(params["b3"], f32),
                           jnp.asarray(params["b6"], f32)]).reshape(1, 2)

    return dict(w1s=w1s, w1a=w1a, b14=b14, w2=w2, b2=b2, w5=w5, b5=b5,
                w3=w3, w6=w6, b36=b36)


def critic_forward(state, action, kparams):
    """state: (B, S), action: (B, A); kparams from prepare_critic_params.
    Returns (q1, q2), each (B, 1) float32."""
    B, S = state.shape
    A = action.shape[1]

    state = state.astype(jnp.bfloat16)
    action = action.astype(jnp.bfloat16)

    # Batch tiling: replay-minibatch-sized batches get a multi-step "parallel"
    # grid so both v7x TensorCores work; tiny batches stay single-step.
    if B >= 256:
        block_b = 128
    else:
        block_b = _round_up(B, 16)
    B_pad = _round_up(B, block_b)
    if B_pad != B:
        pad = B_pad - B
        state = jnp.pad(state, ((0, pad), (0, 0)))
        action = jnp.pad(action, ((0, pad), (0, 0)))
    grid = (B_pad // block_b,)

    def batch_spec(cols):
        return pl.BlockSpec((block_b, cols), lambda i: (i, 0))

    def full_spec(arr):
        # Whole weight/bias resident in VMEM; same block index every step
        # -> not re-DMA'd across grid steps.
        return pl.BlockSpec(arr.shape, lambda i: (0, 0))

    ordered = [kparams[k] for k in
               ("w1s", "w1a", "b14", "w2", "b2", "w5", "b5", "w3", "w6", "b36")]

    flops = 2 * B_pad * ((S + A) * 2 * HIDDEN + 2 * HIDDEN * HIDDEN + 2 * HIDDEN * 2)
    bytes_accessed = (int(state.size) + int(action.size)) * 2 \
        + sum(int(a.size) * a.dtype.itemsize for a in ordered) \
        + B_pad * 2 * 4
    cost = pl.CostEstimate(flops=int(flops), transcendentals=0,
                           bytes_accessed=int(bytes_accessed))

    q = pl.pallas_call(
        _critic_kernel,
        out_shape=jax.ShapeDtypeStruct((B_pad, 2), jnp.float32),
        grid=grid,
        in_specs=[batch_spec(S), batch_spec(A)] + [full_spec(a) for a in ordered],
        out_specs=pl.BlockSpec((block_b, 2), lambda i: (i, 0)),
        compiler_params=pltpu.CompilerParams(
            dimension_semantics=("parallel",)),
        cost_estimate=cost,
    )(state, action, *ordered)

    q = q[:B]
    return q[:, 0:1], q[:, 1:2]


def init_critic_params(key, state_dim, action_dim):
    """Deterministic init matching nn.Linear default (uniform +/- 1/sqrt(fan_in))."""
    dims = [
        (256, state_dim + action_dim),  # l1
        (256, 256),                     # l2
        (1, 256),                       # l3
        (256, state_dim + action_dim),  # l4
        (256, 256),                     # l5
        (1, 256),                       # l6
    ]
    params = {}
    for i, (out_f, in_f) in enumerate(dims, start=1):
        key, kw, kb = jax.random.split(key, 3)
        bound = 1.0 / jnp.sqrt(jnp.float32(in_f))
        params[f"w{i}"] = jax.random.uniform(kw, (out_f, in_f), jnp.float32, -bound, bound)
        params[f"b{i}"] = jax.random.uniform(kb, (out_f,), jnp.float32, -bound, bound)
    return params


def critic_reference(state, action, params):
    """Pure-JAX f32 reference for correctness checking."""
    sa = jnp.concatenate([state, action], axis=1)

    def branch(i0):
        h = jnp.maximum(sa @ params[f"w{i0}"].T + params[f"b{i0}"], 0.0)
        h = jnp.maximum(h @ params[f"w{i0+1}"].T + params[f"b{i0+1}"], 0.0)
        return h @ params[f"w{i0+2}"].T + params[f"b{i0+2}"]

    return branch(1), branch(4)


if __name__ == "__main__":
    key = jax.random.PRNGKey(0)
    state_dim, action_dim, batch = 17, 6, 256   # SAC replay-minibatch sized batch

    k_params, k_state, k_action = jax.random.split(key, 3)
    params = init_critic_params(k_params, state_dim, action_dim)
    kparams = prepare_critic_params(params, state_dim)   # one-time repack (no per-call transposes)

    state = jax.random.normal(k_state, (batch, state_dim), jnp.float32)
    action = jax.random.normal(k_action, (batch, action_dim), jnp.float32)

    q1, q2 = critic_forward(state, action, kparams)
    q1 = jax.block_until_ready(q1)
    q2 = jax.block_until_ready(q2)

    r1, r2 = critic_reference(state, action, params)
    assert q1.shape == (batch, 1) and q2.shape == (batch, 1)
    # bf16 weights/activations (f32 accumulation) -> loose tolerance vs f32 reference.
    assert jnp.allclose(q1, r1, atol=5e-2, rtol=5e-2), float(jnp.max(jnp.abs(q1 - r1)))
    assert jnp.allclose(q2, r2, atol=5e-2, rtol=5e-2), float(jnp.max(jnp.abs(q2 - r2)))

    print("KERNEL_OK")
</pallas_src>

<mosaic_0001>
module attributes {stable_mosaic.version = 11 : i64} {
  func.func @_critic_kernel(%arg0: i32, %arg1: memref<128x17xbf16, #tpu.memory_space<vmem>>, %arg2: memref<128x6xbf16, #tpu.memory_space<vmem>>, %arg3: memref<17x512xbf16, #tpu.memory_space<vmem>>, %arg4: memref<6x512xbf16, #tpu.memory_space<vmem>>, %arg5: memref<1x512xf32, #tpu.memory_space<vmem>>, %arg6: memref<256x256xbf16, #tpu.memory_space<vmem>>, %arg7: memref<1x256xf32, #tpu.memory_space<vmem>>, %arg8: memref<256x256xbf16, #tpu.memory_space<vmem>>, %arg9: memref<1x256xf32, #tpu.memory_space<vmem>>, %arg10: memref<256x2xbf16, #tpu.memory_space<vmem>>, %arg11: memref<256x2xbf16, #tpu.memory_space<vmem>>, %arg12: memref<1x2xf32, #tpu.memory_space<vmem>>, %arg13: memref<128x2xf32, #tpu.memory_space<vmem>>) attributes {dimension_semantics = [#tpu.dimension_semantics<parallel>], iteration_bounds = array<i64: 2>, scalar_prefetch = 0 : i64, scratch_operands = 0 : i64, tpu.core_type = #tpu.core_type<tc>, window_params = [{transform_indices = @transform_0, window_bounds = array<i64: 128, 17>}, {transform_indices = @transform_1, window_bounds = array<i64: 128, 6>}, {pipeline_mode = #tpu.pipeline_mode<synchronous>, transform_indices = @transform_2, window_bounds = array<i64: 17, 512>}, {pipeline_mode = #tpu.pipeline_mode<synchronous>, transform_indices = @transform_3, window_bounds = array<i64: 6, 512>}, {pipeline_mode = #tpu.pipeline_mode<synchronous>, transform_indices = @transform_4, window_bounds = array<i64: 1, 512>}, {pipeline_mode = #tpu.pipeline_mode<synchronous>, transform_indices = @transform_5, window_bounds = array<i64: 256, 256>}, {pipeline_mode = #tpu.pipeline_mode<synchronous>, transform_indices = @transform_6, window_bounds = array<i64: 1, 256>}, {pipeline_mode = #tpu.pipeline_mode<synchronous>, transform_indices = @transform_7, window_bounds = array<i64: 256, 256>}, {pipeline_mode = #tpu.pipeline_mode<synchronous>, transform_indices = @transform_8, window_bounds = array<i64: 1, 256>}, {pipeline_mode = #tpu.pipeline_mode<synchronous>, transform_indices = @transform_9, window_bounds = array<i64: 256, 2>}, {pipeline_mode = #tpu.pipeline_mode<synchronous>, transform_indices = @transform_10, window_bounds = array<i64: 256, 2>}, {pipeline_mode = #tpu.pipeline_mode<synchronous>, transform_indices = @transform_11, window_bounds = array<i64: 1, 2>}, {transform_indices = @transform_12, window_bounds = array<i64: 128, 2>}]} {
    %c0 = arith.constant 0 : index
    %c0_0 = arith.constant 0 : index
    %0 = vector.load %arg1[%c0, %c0_0] : memref<128x17xbf16, #tpu.memory_space<vmem>>, vector<128x17xbf16>
    %c0_1 = arith.constant 0 : index
    %c0_2 = arith.constant 0 : index
    %1 = vector.load %arg3[%c0_1, %c0_2] : memref<17x512xbf16, #tpu.memory_space<vmem>>, vector<17x512xbf16>
    %cst = arith.constant dense<0.000000e+00> : vector<128x512xf32>
    %2 = tpu.matmul %0, %1, %cst {dimension_numbers = #tpu.dot_dimension_numbers<[1], [0], [0], [1], [0, 0, 1, 1], [], []>} : vector<128x17xbf16>, vector<17x512xbf16>, vector<128x512xf32> -> vector<128x512xf32>
    %c0_3 = arith.constant 0 : index
    %c0_4 = arith.constant 0 : index
    %3 = vector.load %arg2[%c0_3, %c0_4] : memref<128x6xbf16, #tpu.memory_space<vmem>>, vector<128x6xbf16>
    %c0_5 = arith.constant 0 : index
    %c0_6 = arith.constant 0 : index
    %4 = vector.load %arg4[%c0_5, %c0_6] : memref<6x512xbf16, #tpu.memory_space<vmem>>, vector<6x512xbf16>
    %cst_7 = arith.constant dense<0.000000e+00> : vector<128x512xf32>
    %5 = tpu.matmul %3, %4, %cst_7 {dimension_numbers = #tpu.dot_dimension_numbers<[1], [0], [0], [1], [0, 0, 1, 1], [], []>} : vector<128x6xbf16>, vector<6x512xbf16>, vector<128x512xf32> -> vector<128x512xf32>
    %6 = arith.addf %2, %5 : vector<128x512xf32>
    %c0_8 = arith.constant 0 : index
    %c0_9 = arith.constant 0 : index
    %7 = vector.load %arg5[%c0_8, %c0_9] : memref<1x512xf32, #tpu.memory_space<vmem>>, vector<1x512xf32>
    %8 = vector.broadcast %7 : vector<1x512xf32> to vector<128x512xf32>
    %9 = arith.addf %6, %8 : vector<128x512xf32>
    %cst_10 = arith.constant 0.000000e+00 : f32
    %10 = vector.broadcast %cst_10 : f32 to vector<128x512xf32>
    %11 = arith.maximumf %9, %10 : vector<128x512xf32>
    %12 = arith.truncf %11 : vector<128x512xf32> to vector<128x512xbf16>
    %13 = vector.extract_strided_slice %12 {offsets = [0, 0], sizes = [128, 256], strides = [1, 1]} : vector<128x512xbf16> to vector<128x256xbf16>
    %14 = vector.extract_strided_slice %12 {offsets = [0, 256], sizes = [128, 256], strides = [1, 1]} : vector<128x512xbf16> to vector<128x256xbf16>
    %c0_11 = arith.constant 0 : index
    %c0_12 = arith.constant 0 : index
    %15 = vector.load %arg6[%c0_11, %c0_12] : memref<256x256xbf16, #tpu.memory_space<vmem>>, vector<256x256xbf16>
    %cst_13 = arith.constant dense<0.000000e+00> : vector<128x256xf32>
    %16 = tpu.matmul %13, %15, %cst_13 {dimension_numbers = #tpu.dot_dimension_numbers<[1], [0], [0], [1], [0, 0, 1, 1], [], []>} : vector<128x256xbf16>, vector<256x256xbf16>, vector<128x256xf32> -> vector<128x256xf32>
    %c0_14 = arith.constant 0 : index
    %c0_15 = arith.constant 0 : index
    %17 = vector.load %arg7[%c0_14, %c0_15] : memref<1x256xf32, #tpu.memory_space<vmem>>, vector<1x256xf32>
    %18 = vector.broadcast %17 : vector<1x256xf32> to vector<128x256xf32>
    %19 = arith.addf %16, %18 : vector<128x256xf32>
    %cst_16 = arith.constant 0.000000e+00 : f32
    %20 = vector.broadcast %cst_16 : f32 to vector<128x256xf32>
    %21 = arith.maximumf %19, %20 : vector<128x256xf32>
    %22 = arith.truncf %21 : vector<128x256xf32> to vector<128x256xbf16>
    %c0_17 = arith.constant 0 : index
    %c0_18 = arith.constant 0 : index
    %23 = vector.load %arg8[%c0_17, %c0_18] : memref<256x256xbf16, #tpu.memory_space<vmem>>, vector<256x256xbf16>
    %cst_19 = arith.constant dense<0.000000e+00> : vector<128x256xf32>
    %24 = tpu.matmul %14, %23, %cst_19 {dimension_numbers = #tpu.dot_dimension_numbers<[1], [0], [0], [1], [0, 0, 1, 1], [], []>} : vector<128x256xbf16>, vector<256x256xbf16>, vector<128x256xf32> -> vector<128x256xf32>
    %c0_20 = arith.constant 0 : index
    %c0_21 = arith.constant 0 : index
    %25 = vector.load %arg9[%c0_20, %c0_21] : memref<1x256xf32, #tpu.memory_space<vmem>>, vector<1x256xf32>
    %26 = vector.broadcast %25 : vector<1x256xf32> to vector<128x256xf32>
    %27 = arith.addf %24, %26 : vector<128x256xf32>
    %cst_22 = arith.constant 0.000000e+00 : f32
    %28 = vector.broadcast %cst_22 : f32 to vector<128x256xf32>
    %29 = arith.maximumf %27, %28 : vector<128x256xf32>
    %30 = arith.truncf %29 : vector<128x256xf32> to vector<128x256xbf16>
    %c0_23 = arith.constant 0 : index
    %c0_24 = arith.constant 0 : index
    %31 = vector.load %arg10[%c0_23, %c0_24] : memref<256x2xbf16, #tpu.memory_space<vmem>>, vector<256x2xbf16>
    %cst_25 = arith.constant dense<0.000000e+00> : vector<128x2xf32>
    %32 = tpu.matmul %22, %31, %cst_25 {dimension_numbers = #tpu.dot_dimension_numbers<[1], [0], [0], [1], [0, 0, 1, 1], [], []>} : vector<128x256xbf16>, vector<256x2xbf16>, vector<128x2xf32> -> vector<128x2xf32>
    %c0_26 = arith.constant 0 : index
    %c0_27 = arith.constant 0 : index
    %33 = vector.load %arg11[%c0_26, %c0_27] : memref<256x2xbf16, #tpu.memory_space<vmem>>, vector<256x2xbf16>
    %cst_28 = arith.constant dense<0.000000e+00> : vector<128x2xf32>
    %34 = tpu.matmul %30, %33, %cst_28 {dimension_numbers = #tpu.dot_dimension_numbers<[1], [0], [0], [1], [0, 0, 1, 1], [], []>} : vector<128x256xbf16>, vector<256x2xbf16>, vector<128x2xf32> -> vector<128x2xf32>
    %35 = arith.addf %32, %34 : vector<128x2xf32>
    %c0_29 = arith.constant 0 : index
    %c0_30 = arith.constant 0 : index
    %36 = vector.load %arg12[%c0_29, %c0_30] : memref<1x2xf32, #tpu.memory_space<vmem>>, vector<1x2xf32>
    %37 = vector.broadcast %36 : vector<1x2xf32> to vector<128x2xf32>
    %38 = arith.addf %35, %37 : vector<128x2xf32>
    %c0_31 = arith.constant 0 : index
    %c0_32 = arith.constant 0 : index
    %39 = vector.load %arg13[%c0_31, %c0_32] : memref<128x2xf32, #tpu.memory_space<vmem>>, vector<128x2xf32>
    tpu.vector_store %arg13[%c0_31, %c0_32], %38 {strides = array<i32>} : memref<128x2xf32, #tpu.memory_space<vmem>>, vector<128x2xf32>,
    return
  }
  func.func @transform_0(%arg0: i32) -> (i32, i32) {
    %c0_i32 = arith.constant 0 : i32
    %c0_i32_0 = arith.constant 0 : i32
    return %arg0, %c0_i32 : i32, i32
  }
  func.func @transform_1(%arg0: i32) -> (i32, i32) {
    %c0_i32 = arith.constant 0 : i32
    %c0_i32_0 = arith.constant 0 : i32
    return %arg0, %c0_i32 : i32, i32
  }
  func.func @transform_2(%arg0: i32) -> (i32, i32) {
    %c0_i32 = arith.constant 0 : i32
    %c0_i32_0 = arith.constant 0 : i32
    %c0_i32_1 = arith.constant 0 : i32
    return %c0_i32, %c0_i32_0 : i32, i32
  }
  func.func @transform_3(%arg0: i32) -> (i32, i32) {
    %c0_i32 = arith.constant 0 : i32
    %c0_i32_0 = arith.constant 0 : i32
    %c0_i32_1 = arith.constant 0 : i32
    return %c0_i32, %c0_i32_0 : i32, i32
  }
  func.func @transform_4(%arg0: i32) -> (i32, i32) {
    %c0_i32 = arith.constant 0 : i32
    %c0_i32_0 = arith.constant 0 : i32
    %c0_i32_1 = arith.constant 0 : i32
    return %c0_i32, %c0_i32_0 : i32, i32
  }
  func.func @transform_5(%arg0: i32) -> (i32, i32) {
    %c0_i32 = arith.constant 0 : i32
    %c0_i32_0 = arith.constant 0 : i32
    %c0_i32_1 = arith.constant 0 : i32
    return %c0_i32, %c0_i32_0 : i32, i32
  }
  func.func @transform_6(%arg0: i32) -> (i32, i32) {
    %c0_i32 = arith.constant 0 : i32
    %c0_i32_0 = arith.constant 0 : i32
    %c0_i32_1 = arith.constant 0 : i32
    return %c0_i32, %c0_i32_0 : i32, i32
  }
  func.func @transform_7(%arg0: i32) -> (i32, i32) {
    %c0_i32 = arith.constant 0 : i32
    %c0_i32_0 = arith.constant 0 : i32
    %c0_i32_1 = arith.constant 0 : i32
    return %c0_i32, %c0_i32_0 : i32, i32
  }
  func.func @transform_8(%arg0: i32) -> (i32, i32) {
    %c0_i32 = arith.constant 0 : i32
    %c0_i32_0 = arith.constant 0 : i32
    %c0_i32_1 = arith.constant 0 : i32
    return %c0_i32, %c0_i32_0 : i32, i32
  }
  func.func @transform_9(%arg0: i32) -> (i32, i32) {
    %c0_i32 = arith.constant 0 : i32
    %c0_i32_0 = arith.constant 0 : i32
    %c0_i32_1 = arith.constant 0 : i32
    return %c0_i32, %c0_i32_0 : i32, i32
  }
  func.func @transform_10(%arg0: i32) -> (i32, i32) {
    %c0_i32 = arith.constant 0 : i32
    %c0_i32_0 = arith.constant 0 : i32
    %c0_i32_1 = arith.constant 0 : i32
    return %c0_i32, %c0_i32_0 : i32, i32
  }
  func.func @transform_11(%arg0: i32) -> (i32, i32) {
    %c0_i32 = arith.constant 0 : i32
    %c0_i32_0 = arith.constant 0 : i32
    %c0_i32_1 = arith.constant 0 : i32
    return %c0_i32, %c0_i32_0 : i32, i32
  }
  func.func @transform_12(%arg0: i32) -> (i32, i32) {
    %c0_i32 = arith.constant 0 : i32
    %c0_i32_0 = arith.constant 0 : i32
    return %arg0, %c0_i32 : i32, i32
  }
}

</mosaic_0001>

<llo_original>
// kernel: tpu_custom_call.1
$region0: #{tpu_custom_call.1}
  #allocation0 [shape = 'u32[]', space=smem, size = 0x4, offset = 0x4, fixed_abs, tag = 'smem constant byte address 0x4 - core index']
  #allocation1 [shape = 'u32[72,128]{1,0:T(1,128)}', space=vmem, size = 0x9000, scoped, tag = 'internal scratch']
  %s0 = inlined_call_operand.vmem [shape: bf16[256,17], index: 0, kind: input, shape index: {}]
  %s1 = inlined_call_operand.vmem [shape: bf16[256,6], index: 1, kind: input, shape index: {}]
  %s2 = inlined_call_operand.hbm [shape: bf16[17,512], index: 2, kind: input, shape index: {}]
  %s3 = inlined_call_operand.vmem [shape: bf16[6,512], index: 3, kind: input, shape index: {}]
  %s4 = inlined_call_operand.vmem [shape: f32[1,512], index: 4, kind: input, shape index: {}]
  %s5 = inlined_call_operand.vmem [shape: bf16[256,256], index: 5, kind: input, shape index: {}]
  %s6 = inlined_call_operand.vmem [shape: f32[1,256], index: 6, kind: input, shape index: {}]
  %s7 = inlined_call_operand.vmem [shape: bf16[256,256], index: 7, kind: input, shape index: {}]
  %s8 = inlined_call_operand.vmem [shape: f32[1,256], index: 8, kind: input, shape index: {}]
  %s9 = inlined_call_operand.vmem [shape: bf16[256,2], index: 9, kind: input, shape index: {}]
  %s10 = inlined_call_operand.vmem [shape: bf16[256,2], index: 10, kind: input, shape index: {}]
  %s11 = inlined_call_operand.vmem [shape: f32[1,2], index: 11, kind: input, shape index: {}]
  %s12 = inlined_call_operand.vmem [shape: f32[256,2], index: 12, kind: output, shape index: {}]
  %s13 = sld [smem:[#allocation0]]
  $region85: #{tpu_custom_call.1} parent=0
    _
  %s15 = ssub.s32 1, %s13
  %s16 = scalar_select 0, %s15, %s13
  $region1: #{tpu_custom_call.1} parent=0
    #allocation2 [shape = 'u8[24576]{0}', space=vmem, size = 0x6000, scoped, tag = 'input window, operand 2, single buffered']
    #allocation3 [shape = 's32[2]{0}', space=sflag, size = 0x8, scoped, tag = 'scoped memory for tpu_custom_call.1']
    %17 = vsyncpa [#allocation3], 0
    loop: start=0, step=1, limit=4
    $region2: #{tpu_custom_call.1} parent=1 // loop_pre_header
      _
    $region3: #{tpu_custom_call.1} parent=1 // loop_header
      %s19 = sphi 0, %s23
      %p20 = scmp.ge.s32.totalorder %s19, 4
      %s29 = sphi 0, %s31
      %s32 = sphi 0, %s29
      %s33 = sphi 0, %s32
      %s49 = sphi 0, %s33
      %s55 = sphi 0, %s57
      %s58 = sphi 0, %s55
      %s59 = sphi 0, %s58
      %s75 = sphi 0, %s59
      %s79 = sphi 0, %s79
      %s81 = sphi 0, %s79
      %s82 = sphi 0, %s81
      %s96 = sphi 0, %s82
      %s100 = sphi 0, %s100
      %s102 = sphi 0, %s100
      %s103 = sphi 0, %s102
      %s117 = sphi 0, %s103
      %s121 = sphi 0, %s121
      %s123 = sphi 0, %s121
      %s124 = sphi 0, %s123
      %s138 = sphi 0, %s124
      %s142 = sphi 0, %s142
      %s144 = sphi 0, %s142
      %s145 = sphi 0, %s144
      %s159 = sphi 0, %s145
      %s163 = sphi 0, %s163
      %s165 = sphi 0, %s163
      %s166 = sphi 0, %s165
      %s180 = sphi 0, %s166
      %s184 = sphi 0, %s184
      %s186 = sphi 0, %s184
      %s187 = sphi 0, %s186
      %s201 = sphi 0, %s187
      %s205 = sphi 0, %s205
      %s207 = sphi 0, %s205
      %s208 = sphi 0, %s207
      %s222 = sphi 0, %s208
      %s226 = sphi 0, %s226
      %s228 = sphi 0, %s226
      %s229 = sphi 0, %s228
      %s243 = sphi 0, %s229
      %s247 = sphi 0, %s247
      %s249 = sphi 0, %s247
      %s250 = sphi 0, %s249
      %s264 = sphi 0, %s250
      %s268 = sphi 0, %s268
      %s270 = sphi 0, %s268
      %s271 = sphi 0, %s270
      %s285 = sphi 0, %s271
      %s291 = sphi 0, %s293
      %s294 = sphi 0, %s291
      %s295 = sphi 0, %s294
      %s311 = sphi 0, %s295
    $region4: #{tpu_custom_call.1} parent=1 // loop_header_branch
      %22 = sbr.rel (%p20) target = $region8
    $region5: #{tpu_custom_call.1} parent=1 // loop_body
      %s24 = ssub.s32 %s19, 1
      %s25 = ssub.s32 %s19, 2
      %s26 = sadd.s32 %s19, 1
      %s27 = ssub.s32 %s19, %s26
      %p28 = scmp.eq.s32.totalorder %s27, 0
      %s30 = sadd.s32 %s29, 1
      %s31 = scalar_select %p28, %s29, %s30
      %p34 = pneg %p28
      %p35 = scmp.eq.s32.totalorder %s19, 1
      %p36 = por %p34, %p35
      %p37 = scmp.ne.s32.totalorder %s29, %s32
      %p38 = scmp.eq.s32.totalorder %s19, 0
      %p39 = por %p37, %p38
      %p40 = scmp.ne.s32.totalorder %s29, %s32
      %p41 = scmp.eq.s32.totalorder %s24, 1
      %p42 = por %p40, %p41
      %p43 = scmp.ne.s32.totalorder %s32, %s33
      %p44 = scmp.eq.s32.totalorder %s24, 0
      %p45 = por %p43, %p44
      %p46 = scmp.ne.s32.totalorder %s32, %s33
      %p47 = scmp.eq.s32.totalorder %s25, 1
      %p48 = por %p46, %p47
      %p50 = scmp.ne.s32.totalorder %s33, %s49
      %p51 = scmp.eq.s32.totalorder %s25, 0
      %p52 = por %p50, %p51
      %s53 = ssub.s32 %s19, %s26
      %p54 = scmp.eq.s32.totalorder %s53, 0
      %s56 = sadd.s32 %s55, 1
      %s57 = scalar_select %p54, %s55, %s56
      %p60 = pneg %p54
      %p61 = scmp.eq.s32.totalorder %s19, 1
      %p62 = por %p60, %p61
      %p63 = scmp.ne.s32.totalorder %s55, %s58
      %p64 = scmp.eq.s32.totalorder %s19, 0
      %p65 = por %p63, %p64
      %p66 = scmp.ne.s32.totalorder %s55, %s58
      %p67 = scmp.eq.s32.totalorder %s24, 1
      %p68 = por %p66, %p67
      %p69 = scmp.ne.s32.totalorder %s58, %s59
      %p70 = scmp.eq.s32.totalorder %s24, 0
      %p71 = por %p69, %p70
      %p72 = scmp.ne.s32.totalorder %s58, %s59
      %p73 = scmp.eq.s32.totalorder %s25, 1
      %p74 = por %p72, %p73
      %p76 = scmp.ne.s32.totalorder %s59, %s75
      %p77 = scmp.eq.s32.totalorder %s25, 0
      %p78 = por %p76, %p77
      %s80 = sadd.s32 %s79, 1
      %p83 = scmp.eq.s32.totalorder %s19, 1
      %p84 = scmp.ne.s32.totalorder %s79, %s81
      %p85 = scmp.eq.s32.totalorder %s19, 0
      %p86 = por %p84, %p85
      %p87 = scmp.ne.s32.totalorder %s79, %s81
      %p88 = scmp.eq.s32.totalorder %s24, 1
      %p89 = por %p87, %p88
      %p90 = scmp.ne.s32.totalorder %s81, %s82
      %p91 = scmp.eq.s32.totalorder %s24, 0
      %p92 = por %p90, %p91
      %p93 = scmp.ne.s32.totalorder %s81, %s82
      %p94 = scmp.eq.s32.totalorder %s25, 1
      %p95 = por %p93, %p94
      %p97 = scmp.ne.s32.totalorder %s82, %s96
      %p98 = scmp.eq.s32.totalorder %s25, 0
      %p99 = por %p97, %p98
      %s101 = sadd.s32 %s100, 1
      %p104 = scmp.eq.s32.totalorder %s19, 1
      %p105 = scmp.ne.s32.totalorder %s100, %s102
      %p106 = scmp.eq.s32.totalorder %s19, 0
      %p107 = por %p105, %p106
      %p108 = scmp.ne.s32.totalorder %s100, %s102
      %p109 = scmp.eq.s32.totalorder %s24, 1
      %p110 = por %p108, %p109
      %p111 = scmp.ne.s32.totalorder %s102, %s103
      %p112 = scmp.eq.s32.totalorder %s24, 0
      %p113 = por %p111, %p112
      %p114 = scmp.ne.s32.totalorder %s102, %s103
      %p115 = scmp.eq.s32.totalorder %s25, 1
      %p116 = por %p114, %p115
      %p118 = scmp.ne.s32.totalorder %s103, %s117
      %p119 = scmp.eq.s32.totalorder %s25, 0
      %p120 = por %p118, %p119
      %s122 = sadd.s32 %s121, 1
      %p125 = scmp.eq.s32.totalorder %s19, 1
      %p126 = scmp.ne.s32.totalorder %s121, %s123
      %p127 = scmp.eq.s32.totalorder %s19, 0
      %p128 = por %p126, %p127
      %p129 = scmp.ne.s32.totalorder %s121, %s123
      %p130 = scmp.eq.s32.totalorder %s24, 1
      %p131 = por %p129, %p130
      %p132 = scmp.ne.s32.totalorder %s123, %s124
      %p133 = scmp.eq.s32.totalorder %s24, 0
      %p134 = por %p132, %p133
      %p135 = scmp.ne.s32.totalorder %s123, %s124
      %p136 = scmp.eq.s32.totalorder %s25, 1
      %p137 = por %p135, %p136
      %p139 = scmp.ne.s32.totalorder %s124, %s138
      %p140 = scmp.eq.s32.totalorder %s25, 0
      %p141 = por %p139, %p140
      %s143 = sadd.s32 %s142, 1
      %p146 = scmp.eq.s32.totalorder %s19, 1
      %p147 = scmp.ne.s32.totalorder %s142, %s144
      %p148 = scmp.eq.s32.totalorder %s19, 0
      %p149 = por %p147, %p148
      %p150 = scmp.ne.s32.totalorder %s142, %s144
      %p151 = scmp.eq.s32.totalorder %s24, 1
      %p152 = por %p150, %p151
      %p153 = scmp.ne.s32.totalorder %s144, %s145
      %p154 = scmp.eq.s32.totalorder %s24, 0
      %p155 = por %p153, %p154
      %p156 = scmp.ne.s32.totalorder %s144, %s145
      %p157 = scmp.eq.s32.totalorder %s25, 1
      %p158 = por %p156, %p157
      %p160 = scmp.ne.s32.totalorder %s145, %s159
      %p161 = scmp.eq.s32.totalorder %s25, 0
      %p162 = por %p160, %p161
      %s164 = sadd.s32 %s163, 1
      %p167 = scmp.eq.s32.totalorder %s19, 1
      %p168 = scmp.ne.s32.totalorder %s163, %s165
      %p169 = scmp.eq.s32.totalorder %s19, 0
      %p170 = por %p168, %p169
      %p171 = scmp.ne.s32.totalorder %s163, %s165
      %p172 = scmp.eq.s32.totalorder %s24, 1
      %p173 = por %p171, %p172
      %p174 = scmp.ne.s32.totalorder %s165, %s166
      %p175 = scmp.eq.s32.totalorder %s24, 0
      %p176 = por %p174, %p175
      %p177 = scmp.ne.s32.totalorder %s165, %s166
      %p178 = scmp.eq.s32.totalorder %s25, 1
      %p179 = por %p177, %p178
      %p181 = scmp.ne.s32.totalorder %s166, %s180
      %p182 = scmp.eq.s32.totalorder %s25, 0
      %p183 = por %p181, %p182
      %s185 = sadd.s32 %s184, 1
      %p188 = scmp.eq.s32.totalorder %s19, 1
      %p189 = scmp.ne.s32.totalorder %s184, %s186
      %p190 = scmp.eq.s32.totalorder %s19, 0
      %p191 = por %p189, %p190
      %p192 = scmp.ne.s32.totalorder %s184, %s186
      %p193 = scmp.eq.s32.totalorder %s24, 1
      %p194 = por %p192, %p193
      %p195 = scmp.ne.s32.totalorder %s186, %s187
      %p196 = scmp.eq.s32.totalorder %s24, 0
      %p197 = por %p195, %p196
      %p198 = scmp.ne.s32.totalorder %s186, %s187
      %p199 = scmp.eq.s32.totalorder %s25, 1
      %p200 = por %p198, %p199
      %p202 = scmp.ne.s32.totalorder %s187, %s201
      %p203 = scmp.eq.s32.totalorder %s25, 0
      %p204 = por %p202, %p203
      %s206 = sadd.s32 %s205, 1
      %p209 = scmp.eq.s32.totalorder %s19, 1
      %p210 = scmp.ne.s32.totalorder %s205, %s207
      %p211 = scmp.eq.s32.totalorder %s19, 0
      %p212 = por %p210, %p211
      %p213 = scmp.ne.s32.totalorder %s205, %s207
      %p214 = scmp.eq.s32.totalorder %s24, 1
      %p215 = por %p213, %p214
      %p216 = scmp.ne.s32.totalorder %s207, %s208
      %p217 = scmp.eq.s32.totalorder %s24, 0
      %p218 = por %p216, %p217
      %p219 = scmp.ne.s32.totalorder %s207, %s208
      %p220 = scmp.eq.s32.totalorder %s25, 1
      %p221 = por %p219, %p220
      %p223 = scmp.ne.s32.totalorder %s208, %s222
      %p224 = scmp.eq.s32.totalorder %s25, 0
      %p225 = por %p223, %p224
      %s227 = sadd.s32 %s226, 1
      %p230 = scmp.eq.s32.totalorder %s19, 1
      %p231 = scmp.ne.s32.totalorder %s226, %s228
      %p232 = scmp.eq.s32.totalorder %s19, 0
      %p233 = por %p231, %p232
      %p234 = scmp.ne.s32.totalorder %s226, %s228
      %p235 = scmp.eq.s32.totalorder %s24, 1
      %p236 = por %p234, %p235
      %p237 = scmp.ne.s32.totalorder %s228, %s229
      %p238 = scmp.eq.s32.totalorder %s24, 0
      %p239 = por %p237, %p238
      %p240 = scmp.ne.s32.totalorder %s228, %s229
      %p241 = scmp.eq.s32.totalorder %s25, 1
      %p242 = por %p240, %p241
      %p244 = scmp.ne.s32.totalorder %s229, %s243
      %p245 = scmp.eq.s32.totalorder %s25, 0
      %p246 = por %p244, %p245
      %s248 = sadd.s32 %s247, 1
      %p251 = scmp.eq.s32.totalorder %s19, 1
      %p252 = scmp.ne.s32.totalorder %s247, %s249
      %p253 = scmp.eq.s32.totalorder %s19, 0
      %p254 = por %p252, %p253
      %p255 = scmp.ne.s32.totalorder %s247, %s249
      %p256 = scmp.eq.s32.totalorder %s24, 1
      %p257 = por %p255, %p256
      %p258 = scmp.ne.s32.totalorder %s249, %s250
      %p259 = scmp.eq.s32.totalorder %s24, 0
      %p260 = por %p258, %p259
      %p261 = scmp.ne.s32.totalorder %s249, %s250
      %p262 = scmp.eq.s32.totalorder %s25, 1
      %p263 = por %p261, %p262
      %p265 = scmp.ne.s32.totalorder %s250, %s264
      %p266 = scmp.eq.s32.totalorder %s25, 0
      %p267 = por %p265, %p266
      %s269 = sadd.s32 %s268, 1
      %p272 = scmp.eq.s32.totalorder %s19, 1
      %p273 = scmp.ne.s32.totalorder %s268, %s270
      %p274 = scmp.eq.s32.totalorder %s19, 0
      %p275 = por %p273, %p274
      %p276 = scmp.ne.s32.totalorder %s268, %s270
      %p277 = scmp.eq.s32.totalorder %s24, 1
      %p278 = por %p276, %p277
      %p279 = scmp.ne.s32.totalorder %s270, %s271
      %p280 = scmp.eq.s32.totalorder %s24, 0
      %p281 = por %p279, %p280
      %p282 = scmp.ne.s32.totalorder %s270, %s271
      %p283 = scmp.eq.s32.totalorder %s25, 1
      %p284 = por %p282, %p283
      %p286 = scmp.ne.s32.totalorder %s271, %s285
      %p287 = scmp.eq.s32.totalorder %s25, 0
      %p288 = por %p286, %p287
      %s289 = ssub.s32 %s19, %s26
      %p290 = scmp.eq.s32.totalorder %s289, 0
      %s292 = sadd.s32 %s291, 1
      %s293 = scalar_select %p290, %s291, %s292
      %p296 = pneg %p290
      %p297 = scmp.eq.s32.totalorder %s19, 1
      %p298 = por %p296, %p297
      %p299 = scmp.ne.s32.totalorder %s291, %s294
      %p300 = scmp.eq.s32.totalorder %s19, 0
      %p301 = por %p299, %p300
      %p302 = scmp.ne.s32.totalorder %s291, %s294
      %p303 = scmp.eq.s32.totalorder %s24, 1
      %p304 = por %p302, %p303
      %p305 = scmp.ne.s32.totalorder %s294, %s295
      %p306 = scmp.eq.s32.totalorder %s24, 0
      %p307 = por %p305, %p306
      %p308 = scmp.ne.s32.totalorder %s294, %s295
      %p309 = scmp.eq.s32.totalorder %s25, 1
      %p310 = por %p308, %p309
      %p312 = scmp.ne.s32.totalorder %s295, %s311
      %p313 = scmp.eq.s32.totalorder %s25, 0
      %p314 = por %p312, %p313
      %p315 = scmp.le.s32.totalorder 1, %s19
      %p316 = scmp.lt.s32.totalorder %s19, 3
      %p317 = pnand %p315, %p316
      %p318 = pneg %p317
      // Predicated region
      $region9: #{tpu_custom_call.1} parent=5 // pred_check
        _
      $region10: #{tpu_custom_call.1} parent=5 // pred_check_branch
        %320 = sbr.rel (%p317) target = $region12
      $region11: #{tpu_custom_call.1} parent=5 // pred_region
        %s321 = ssub.s32 %s19, 1
        // Predicated region
        $region13: #{tpu_custom_call.1} parent=11 // pred_check
          %p322 = pneg %p92
        $region14: #{tpu_custom_call.1} parent=11 // pred_check_branch
          %324 = sbr.rel (%p322) target = $region16
        $region15: #{tpu_custom_call.1} parent=11 // pred_region
          %326 = vsyncadd [#allocation3], 0
          %s327 = sshll.u32 %s2, 4
          %s328 = int_to_ptr.hbm [resolvable:$true] %s327
          %s329 = sshll.u32 [#allocation2], 4
          %s330 = int_to_ptr.vmem [resolvable:$true] %s329
          %335 = dma.hbm_to_vmem [thread:$0]  %s328, 768, %s330, [#allocation3], 256, 256, 16
        $region16: #{tpu_custom_call.1} parent=11 // pred_fallthru
          _
        // Predicated region
        $region17: #{tpu_custom_call.1} parent=11 // pred_check
          %p336 = pneg %p113
        $region18: #{tpu_custom_call.1} parent=11 // pred_check_branch
          %338 = sbr.rel (%p336) target = $region20
        $region19: #{tpu_custom_call.1} parent=11 // pred_region
          _
        $region20: #{tpu_custom_call.1} parent=11 // pred_fallthru
          _
        // Predicated region
        $region21: #{tpu_custom_call.1} parent=11 // pred_check
          %p339 = pneg %p134
        $region22: #{tpu_custom_call.1} parent=11 // pred_check_branch
          %341 = sbr.rel (%p339) target = $region24
        $region23: #{tpu_custom_call.1} parent=11 // pred_region
          _
        $region24: #{tpu_custom_call.1} parent=11 // pred_fallthru
          _
        // Predicated region
        $region25: #{tpu_custom_call.1} parent=11 // pred_check
          %p342 = pneg %p155
        $region26: #{tpu_custom_call.1} parent=11 // pred_check_branch
          %344 = sbr.rel (%p342) target = $region28
        $region27: #{tpu_custom_call.1} parent=11 // pred_region
          _
        $region28: #{tpu_custom_call.1} parent=11 // pred_fallthru
          _
        // Predicated region
        $region29: #{tpu_custom_call.1} parent=11 // pred_check
          %p345 = pneg %p176
        $region30: #{tpu_custom_call.1} parent=11 // pred_check_branch
          %347 = sbr.rel (%p345) target = $region32
        $region31: #{tpu_custom_call.1} parent=11 // pred_region
          _
        $region32: #{tpu_custom_call.1} parent=11 // pred_fallthru
          _
        // Predicated region
        $region33: #{tpu_custom_call.1} parent=11 // pred_check
          %p348 = pneg %p197
        $region34: #{tpu_custom_call.1} parent=11 // pred_check_branch
          %350 = sbr.rel (%p348) target = $region36
        $region35: #{tpu_custom_call.1} parent=11 // pred_region
          _
        $region36: #{tpu_custom_call.1} parent=11 // pred_fallthru
          _
        // Predicated region
        $region37: #{tpu_custom_call.1} parent=11 // pred_check
          %p351 = pneg %p218
        $region38: #{tpu_custom_call.1} parent=11 // pred_check_branch
          %353 = sbr.rel (%p351) target = $region40
        $region39: #{tpu_custom_call.1} parent=11 // pred_region
          _
        $region40: #{tpu_custom_call.1} parent=11 // pred_fallthru
          _
        // Predicated region
        $region41: #{tpu_custom_call.1} parent=11 // pred_check
          %p354 = pneg %p239
        $region42: #{tpu_custom_call.1} parent=11 // pred_check_branch
          %356 = sbr.rel (%p354) target = $region44
        $region43: #{tpu_custom_call.1} parent=11 // pred_region
          _
        $region44: #{tpu_custom_call.1} parent=11 // pred_fallthru
          _
        // Predicated region
        $region45: #{tpu_custom_call.1} parent=11 // pred_check
          %p357 = pneg %p260
        $region46: #{tpu_custom_call.1} parent=11 // pred_check_branch
          %359 = sbr.rel (%p357) target = $region48
        $region47: #{tpu_custom_call.1} parent=11 // pred_region
          _
        $region48: #{tpu_custom_call.1} parent=11 // pred_fallthru
          _
        // Predicated region
        $region49: #{tpu_custom_call.1} parent=11 // pred_check
          %p360 = pneg %p281
        $region50: #{tpu_custom_call.1} parent=11 // pred_check_branch
          %362 = sbr.rel (%p360) target = $region52
        $region51: #{tpu_custom_call.1} parent=11 // pred_region
          _
        $region52: #{tpu_custom_call.1} parent=11 // pred_fallthru
          _
      $region12: #{tpu_custom_call.1} parent=5 // pred_fallthru
        _
      %p363 = scmp.lt.s32.totalorder %s19, 2
      // Predicated region
      $region53: #{tpu_custom_call.1} parent=5 // pred_check
        %p364 = pneg %p363
      $region54: #{tpu_custom_call.1} parent=5 // pred_check_branch
        %366 = sbr.rel (%p364) target = $region56
      $region55: #{tpu_custom_call.1} parent=5 // pred_region
        // Predicated region
        $region57: #{tpu_custom_call.1} parent=55 // pred_check
          %p367 = pneg %p39
        $region58: #{tpu_custom_call.1} parent=55 // pred_check_branch
          %369 = sbr.rel (%p367) target = $region60
        $region59: #{tpu_custom_call.1} parent=55 // pred_region
          %s370 = smul.u32 16, %s19
          %p371 = scmp.lt.s32.totalorder %s370, 31
          %s372 = scalar_select %p371, %s370, 31
          %s373 = smul.addr %s372, 4
          %s374 = scalar_lea.vmem %s0, %s373
          %s375 = smul.u32 16, %s19
        $region60: #{tpu_custom_call.1} parent=55 // pred_fallthru
          _
        // Predicated region
        $region61: #{tpu_custom_call.1} parent=55 // pred_check
          %p376 = pneg %p65
        $region62: #{tpu_custom_call.1} parent=55 // pred_check_branch
          %378 = sbr.rel (%p376) target = $region64
        $region63: #{tpu_custom_call.1} parent=55 // pred_region
          %s379 = smul.u32 16, %s19
          %p380 = scmp.lt.s32.totalorder %s379, 31
          %s381 = scalar_select %p380, %s379, 31
          %s382 = smul.addr %s381, 4
          %s383 = scalar_lea.vmem %s1, %s382
          %s384 = smul.u32 16, %s19
        $region64: #{tpu_custom_call.1} parent=55 // pred_fallthru
          _
      $region56: #{tpu_custom_call.1} parent=5 // pred_fallthru
        _
      %p385 = scmp.le.s32.totalorder 1, %s19
      %p386 = scmp.lt.s32.totalorder %s19, 3
      %p387 = pnand %p385, %p386
      %p388 = pneg %p387
      // Predicated region
      $region65: #{tpu_custom_call.1} parent=5 // pred_check
        _
      $region66: #{tpu_custom_call.1} parent=5 // pred_check_branch
        %390 = sbr.rel (%p387) target = $region68
      $region67: #{tpu_custom_call.1} parent=5 // pred_region
        %s391 = ssub.s32 %s19, 1
        // Predicated region
        $region69: #{tpu_custom_call.1} parent=67 // pred_check
          %p392 = pneg %p92
        $region70: #{tpu_custom_call.1} parent=67 // pred_check_branch
          %394 = sbr.rel (%p392) target = $region72
        $region71: #{tpu_custom_call.1} parent=67 // pred_region
          %396 = dma.done [#allocation3], 768
        $region72: #{tpu_custom_call.1} parent=67 // pred_fallthru
          _
        %s397 = smul.u32 16, %s24
        %p398 = scmp.lt.s32.totalorder %s397, 31
        %s399 = scalar_select %p398, %s397, 31
        %s400 = smul.addr %s399, 4
        %s401 = scalar_lea.vmem %s0, %s400
        %p402 = pneg %p45
        %p403 = pneg %p42
        %s404 = smul.u32 16, %s24
        %p405 = scmp.lt.s32.totalorder %s404, 31
        %s406 = scalar_select %p405, %s404, 31
        %s407 = smul.addr %s406, 4
        %s408 = scalar_lea.vmem %s1, %s407
        %p409 = pneg %p71
        %p410 = pneg %p68
        %p411 = pneg %p92
        %p412 = pneg %p89
        %p413 = pneg %p113
        %p414 = pneg %p110
        %p415 = pneg %p134
        %p416 = pneg %p131
        %p417 = pneg %p155
        %p418 = pneg %p152
        %p419 = pneg %p176
        %p420 = pneg %p173
        %p421 = pneg %p197
        %p422 = pneg %p194
        %p423 = pneg %p218
        %p424 = pneg %p215
        %p425 = pneg %p239
        %p426 = pneg %p236
        %p427 = pneg %p260
        %p428 = pneg %p257
        %p429 = pneg %p281
        %p430 = pneg %p278
        %p431 = pneg %p307
        %p432 = pneg %p304
        %s433 = smul.u32 16, %s24
        %p434 = scmp.lt.s32.totalorder %s433, 31
        %s435 = scalar_select %p434, %s433, 31
        %s436 = smul.addr %s435, 8
        %s437 = scalar_lea.vmem %s12, %s436
        %s438 = smul.u32 16, %s24
        %p439 = scmp.lt.s32.totalorder %s438, 31
        %s440 = scalar_select %p439, %s438, 31
        %s441 = smul.addr %s440, 4
        %s442 = scalar_lea.vmem %s0, %s441
        %s443 = smul.u32 16, %s24
        %s444 = smul.u32 16, %s24
        %p445 = scmp.lt.s32.totalorder %s444, 31
        %s446 = scalar_select %p445, %s444, 31
        %s447 = smul.addr %s446, 4
        %s448 = scalar_lea.vmem %s1, %s447
        %s449 = smul.u32 16, %s24
        %s450 = smul.u32 16, %s24
        %p451 = scmp.lt.s32.totalorder %s450, 31
        %s452 = scalar_select %p451, %s450, 31
        %s453 = smul.addr %s452, 8
        %s454 = scalar_lea.vmem %s12, %s453
        %s455 = smul.u32 16, %s24
        %v457 = vld [vmem:[%s442] sm:$0xf]
        %v458 = vld [vmem:[%s442 + $0x4] sm:$0xf]
        %v459 = vld [vmem:[%s442 + $0x8] sm:$0xf]
        %v460 = vld [vmem:[%s442 + $0xc] sm:$0xf]
        %v461 = vld [vmem:[%s442 + $0x10] sm:$0xf]
        %v462 = vld [vmem:[%s442 + $0x14] sm:$0xf]
        %v463 = vld [vmem:[%s442 + $0x18] sm:$0xf]
        %v464 = vld [vmem:[%s442 + $0x1c] sm:$0xf]
        %v465 = vld [vmem:[%s442 + $0x20] sm:$0xf]
        %v466 = vld [vmem:[%s442 + $0x24] sm:$0xf]
        %v467 = vld [vmem:[%s442 + $0x28] sm:$0xf]
        %v468 = vld [vmem:[%s442 + $0x2c] sm:$0xf]
        %v469 = vld [vmem:[%s442 + $0x30] sm:$0xf]
        %v470 = vld [vmem:[%s442 + $0x34] sm:$0xf]
        %v471 = vld [vmem:[%s442 + $0x38] sm:$0xf]
        %v472 = vld [vmem:[%s442 + $0x3c] sm:$0xf]
        %v473 = vld [vmem:[#allocation2] sm:$0xff]
        %v474 = vld [vmem:[#allocation2 + $0x8] sm:$0xff]
        %v475 = vld [vmem:[#allocation2 + $0x10] sm:$0xff]
        %v476 = vld [vmem:[#allocation2 + $0x18] sm:$0xff]
        %v477 = vld [vmem:[#allocation2 + $0x20] sm:$0x11]
        %v478 = vld [vmem:[#allocation2 + $0x28] sm:$0x11]
        %v479 = vld [vmem:[%s448] sm:$0xf]
        %v480 = vld [vmem:[%s448 + $0x4] sm:$0xf]
        %v481 = vld [vmem:[%s448 + $0x8] sm:$0xf]
        %v482 = vld [vmem:[%s448 + $0xc] sm:$0xf]
        %v483 = vld [vmem:[%s448 + $0x10] sm:$0xf]
        %v484 = vld [vmem:[%s448 + $0x14] sm:$0xf]
        %v485 = vld [vmem:[%s448 + $0x18] sm:$0xf]
        %v486 = vld [vmem:[%s448 + $0x1c] sm:$0xf]
        %v487 = vld [vmem:[%s448 + $0x20] sm:$0xf]
        %v488 = vld [vmem:[%s448 + $0x24] sm:$0xf]
        %v489 = vld [vmem:[%s448 + $0x28] sm:$0xf]
        %v490 = vld [vmem:[%s448 + $0x2c] sm:$0xf]
        %v491 = vld [vmem:[%s448 + $0x30] sm:$0xf]
        %v492 = vld [vmem:[%s448 + $0x34] sm:$0xf]
        %v493 = vld [vmem:[%s448 + $0x38] sm:$0xf]
        %v494 = vld [vmem:[%s448 + $0x3c] sm:$0xf]
        %v495 = vld [vmem:[%s3] sm:$0x77]
        %v496 = vld [vmem:[%s3 + $0x8] sm:$0x77]
        %v513 = vunpack.c.l.b16 %v479
        %v514 = vunpack.c.l.b16 %v480
        %v515 = vunpack.c.l.b16 %v481
        %v516 = vunpack.c.l.b16 %v482
        %v517 = vunpack.c.l.b16 %v483
        %v518 = vunpack.c.l.b16 %v484
        %v519 = vunpack.c.l.b16 %v485
        %v520 = vunpack.c.l.b16 %v486
        %v521 = vunpack.c.l.b16 %v487
        %v522 = vunpack.c.l.b16 %v488
        %v523 = vunpack.c.l.b16 %v489
        %v524 = vunpack.c.l.b16 %v490
        %v525 = vunpack.c.l.b16 %v491
        %v526 = vunpack.c.l.b16 %v492
        %v527 = vunpack.c.l.b16 %v493
        %v528 = vunpack.c.l.b16 %v494
        %v529 = vpack.c.b16 %v514, %v513
        %v530 = vpack.c.b16 %v516, %v515
        %v531 = vpack.c.b16 %v518, %v517
        %v532 = vpack.c.b16 %v520, %v519
        %v533 = vpack.c.b16 %v522, %v521
        %v534 = vpack.c.b16 %v524, %v523
        %v535 = vpack.c.b16 %v526, %v525
        %v536 = vpack.c.b16 %v528, %v527
        %v539 = vunpack.c.l.b16 %v495
        %v540 = vunpack.c.h.b16 %v495
        %v541 = vunpack.c.l.b16 %v496
        %v542 = vunpack.c.h.b16 %v496
        %v543 = vpack.c.b16 %v539, %v539
        %v544 = vpack.c.b16 %v540, %v540
        %v545 = vpack.c.b16 %v541, %v541
        %v546 = vpack.c.b16 %v542, %v542
        %vm547 = vcmask 48128
        %v549 = vsel %vm547, %v529, 0
        %v552 = vsel %vm547, %v530, 0
        %v555 = vsel %vm547, %v531, 0
        %v558 = vsel %vm547, %v532, 0
        %v561 = vsel %vm547, %v533, 0
        %v564 = vsel %vm547, %v534, 0
        %v567 = vsel %vm547, %v535, 0
        %v570 = vsel %vm547, %v536, 0
        %vm572 = vcmask 1042432
        %v574 = vsel %vm572, %v543, 0
        %v577 = vsel %vm572, %v544, 0
        %v580 = vsel %vm572, %v545, 0
        %v583 = vsel %vm572, %v546, 0
        %585 = vmatpush.bf16.msra.mxu0 0
        %586 = vmatpush.bf16.msra.mxu0 0
        %587 = vmatpush.bf16.msra.mxu0 0
        %588 = vmatpush.bf16.msra.mxu0 0
        %589 = vmatpush.bf16.msra.mxu0 0
        %590 = vmatpush.bf16.msra.mxu0 0
        %591 = vmatpush.bf16.msra.mxu0 0
        %592 = vmatpush.bf16.msra.mxu0 %v574
        %593 = vmatmul.bf16.gmra.mxu0 %v549
        %v594 = vpop.f32.mrf.mxu0
        %v595 = vadd.f32 0.0, %v594
        %v596 = vpop.f32.mrf.mxu0
        %v597 = vadd.f32 0.0, %v596
        %598 = vmatmul.bf16.gmra.mxu0 %v552
        %v599 = vpop.f32.mrf.mxu0
        %v600 = vadd.f32 0.0, %v599
        %v601 = vpop.f32.mrf.mxu0
        %v602 = vadd.f32 0.0, %v601
        %603 = vmatmul.bf16.gmra.mxu0 %v555
        %v604 = vpop.f32.mrf.mxu0
        %v605 = vadd.f32 0.0, %v604
        %v606 = vpop.f32.mrf.mxu0
        %v607 = vadd.f32 0.0, %v606
        %608 = vmatmul.bf16.gmra.mxu0 %v558
        %v609 = vpop.f32.mrf.mxu0
        %v610 = vadd.f32 0.0, %v609
        %v611 = vpop.f32.mrf.mxu0
        %v612 = vadd.f32 0.0, %v611
        %613 = vmatmul.bf16.gmra.mxu0 %v561
        %v614 = vpop.f32.mrf.mxu0
        %v615 = vadd.f32 0.0, %v614
        %v616 = vpop.f32.mrf.mxu0
        %v617 = vadd.f32 0.0, %v616
        %618 = vmatmul.bf16.gmra.mxu0 %v564
        %v619 = vpop.f32.mrf.mxu0
        %v620 = vadd.f32 0.0, %v619
        %v621 = vpop.f32.mrf.mxu0
        %v622 = vadd.f32 0.0, %v621
        %623 = vmatmul.bf16.gmra.mxu0 %v567
        %v624 = vpop.f32.mrf.mxu0
        %v625 = vadd.f32 0.0, %v624
        %v626 = vpop.f32.mrf.mxu0
        %v627 = vadd.f32 0.0, %v626
        %628 = vmatmul.bf16.gmra.mxu0 %v570
        %v629 = vpop.f32.mrf.mxu0
        %v630 = vadd.f32 0.0, %v629
        %v631 = vpop.f32.mrf.mxu0
        %v632 = vadd.f32 0.0, %v631
        %633 = vdwg.mxu0
        %634 = vmatpush.bf16.msra.mxu0 0
        %635 = vmatpush.bf16.msra.mxu0 0
        %636 = vmatpush.bf16.msra.mxu0 0
        %637 = vmatpush.bf16.msra.mxu0 0
        %638 = vmatpush.bf16.msra.mxu0 0
        %639 = vmatpush.bf16.msra.mxu0 0
        %640 = vmatpush.bf16.msra.mxu0 0
        %641 = vmatpush.bf16.msra.mxu0 %v577
        %642 = vmatmul.bf16.gmra.mxu0 %v549
        %v643 = vpop.f32.mrf.mxu0
        %v644 = vadd.f32 0.0, %v643
        %v645 = vpop.f32.mrf.mxu0
        %v646 = vadd.f32 0.0, %v645
        %647 = vmatmul.bf16.gmra.mxu0 %v552
        %v648 = vpop.f32.mrf.mxu0
        %v649 = vadd.f32 0.0, %v648
        %v650 = vpop.f32.mrf.mxu0
        %v651 = vadd.f32 0.0, %v650
        %652 = vmatmul.bf16.gmra.mxu0 %v555
        %v653 = vpop.f32.mrf.mxu0
        %v654 = vadd.f32 0.0, %v653
        %v655 = vpop.f32.mrf.mxu0
        %v656 = vadd.f32 0.0, %v655
        %657 = vmatmul.bf16.gmra.mxu0 %v558
        %v658 = vpop.f32.mrf.mxu0
        %v659 = vadd.f32 0.0, %v658
        %v660 = vpop.f32.mrf.mxu0
        %v661 = vadd.f32 0.0, %v660
        %662 = vmatmul.bf16.gmra.mxu0 %v561
        %v663 = vpop.f32.mrf.mxu0
        %v664 = vadd.f32 0.0, %v663
        %v665 = vpop.f32.mrf.mxu0
        %v666 = vadd.f32 0.0, %v665
        %667 = vmatmul.bf16.gmra.mxu0 %v564
        %v668 = vpop.f32.mrf.mxu0
        %v669 = vadd.f32 0.0, %v668
        %v670 = vpop.f32.mrf.mxu0
        %v671 = vadd.f32 0.0, %v670
        %672 = vmatmul.bf16.gmra.mxu0 %v567
        %v673 = vpop.f32.mrf.mxu0
        %v674 = vadd.f32 0.0, %v673
        %v675 = vpop.f32.mrf.mxu0
        %v676 = vadd.f32 0.0, %v675
        %677 = vmatmul.bf16.gmra.mxu0 %v570
        %v678 = vpop.f32.mrf.mxu0
        %v679 = vadd.f32 0.0, %v678
        %v680 = vpop.f32.mrf.mxu0
        %v681 = vadd.f32 0.0, %v680
        %682 = vdwg.mxu0
        %683 = vmatpush.bf16.msra.mxu0 0
        %684 = vmatpush.bf16.msra.mxu0 0
        %685 = vmatpush.bf16.msra.mxu0 0
        %686 = vmatpush.bf16.msra.mxu0 0
        %687 = vmatpush.bf16.msra.mxu0 0
        %688 = vmatpush.bf16.msra.mxu0 0
        %689 = vmatpush.bf16.msra.mxu0 0
        %690 = vmatpush.bf16.msra.mxu0 %v580
        %691 = vmatmul.bf16.gmra.mxu0 %v549
        %v692 = vpop.f32.mrf.mxu0
        %v693 = vadd.f32 0.0, %v692
        %v694 = vpop.f32.mrf.mxu0
        %v695 = vadd.f32 0.0, %v694
        %696 = vmatmul.bf16.gmra.mxu0 %v552
        %v697 = vpop.f32.mrf.mxu0
        %v698 = vadd.f32 0.0, %v697
        %v699 = vpop.f32.mrf.mxu0
        %v700 = vadd.f32 0.0, %v699
        %701 = vmatmul.bf16.gmra.mxu0 %v555
        %v702 = vpop.f32.mrf.mxu0
        %v703 = vadd.f32 0.0, %v702
        %v704 = vpop.f32.mrf.mxu0
        %v705 = vadd.f32 0.0, %v704
        %706 = vmatmul.bf16.gmra.mxu0 %v558
        %v707 = vpop.f32.mrf.mxu0
        %v708 = vadd.f32 0.0, %v707
        %v709 = vpop.f32.mrf.mxu0
        %v710 = vadd.f32 0.0, %v709
        %711 = vmatmul.bf16.gmra.mxu0 %v561
        %v712 = vpop.f32.mrf.mxu0
        %v713 = vadd.f32 0.0, %v712
        %v714 = vpop.f32.mrf.mxu0
        %v715 = vadd.f32 0.0, %v714
        %716 = vmatmul.bf16.gmra.mxu0 %v564
        %v717 = vpop.f32.mrf.mxu0
        %v718 = vadd.f32 0.0, %v717
        %v719 = vpop.f32.mrf.mxu0
        %v720 = vadd.f32 0.0, %v719
        %721 = vmatmul.bf16.gmra.mxu0 %v567
        %v722 = vpop.f32.mrf.mxu0
        %v723 = vadd.f32 0.0, %v722
        %v724 = vpop.f32.mrf.mxu0
        %v725 = vadd.f32 0.0, %v724
        %726 = vmatmul.bf16.gmra.mxu0 %v570
        %v727 = vpop.f32.mrf.mxu0
        %v728 = vadd.f32 0.0, %v727
        %v729 = vpop.f32.mrf.mxu0
        %v730 = vadd.f32 0.0, %v729
        %731 = vdwg.mxu0
        %732 = vmatpush.bf16.msra.mxu0 0
        %733 = vmatpush.bf16.msra.mxu0 0
        %734 = vmatpush.bf16.msra.mxu0 0
        %735 = vmatpush.bf16.msra.mxu0 0
        %736 = vmatpush.bf16.msra.mxu0 0
        %737 = vmatpush.bf16.msra.mxu0 0
        %738 = vmatpush.bf16.msra.mxu0 0
        %739 = vmatpush.bf16.msra.mxu0 %v583
        %740 = vmatmul.bf16.gmra.mxu0 %v549
        %v741 = vpop.f32.mrf.mxu0
        %v742 = vadd.f32 0.0, %v741
        %v743 = vpop.f32.mrf.mxu0
        %v744 = vadd.f32 0.0, %v743
        %745 = vmatmul.bf16.gmra.mxu0 %v552
        %v746 = vpop.f32.mrf.mxu0
        %v747 = vadd.f32 0.0, %v746
        %v748 = vpop.f32.mrf.mxu0
        %v749 = vadd.f32 0.0, %v748
        %750 = vmatmul.bf16.gmra.mxu0 %v555
        %v751 = vpop.f32.mrf.mxu0
        %v752 = vadd.f32 0.0, %v751
        %v753 = vpop.f32.mrf.mxu0
        %v754 = vadd.f32 0.0, %v753
        %755 = vmatmul.bf16.gmra.mxu0 %v558
        %v756 = vpop.f32.mrf.mxu0
        %v757 = vadd.f32 0.0, %v756
        %v758 = vpop.f32.mrf.mxu0
        %v759 = vadd.f32 0.0, %v758
        %760 = vmatmul.bf16.gmra.mxu0 %v561
        %v761 = vpop.f32.mrf.mxu0
        %v762 = vadd.f32 0.0, %v761
        %v763 = vpop.f32.mrf.mxu0
        %v764 = vadd.f32 0.0, %v763
        %765 = vmatmul.bf16.gmra.mxu0 %v564
        %v766 = vpop.f32.mrf.mxu0
        %v767 = vadd.f32 0.0, %v766
        %v768 = vpop.f32.mrf.mxu0
        %v769 = vadd.f32 0.0, %v768
        %770 = vmatmul.bf16.gmra.mxu0 %v567
        %v771 = vpop.f32.mrf.mxu0
        %v772 = vadd.f32 0.0, %v771
        %v773 = vpop.f32.mrf.mxu0
        %v774 = vadd.f32 0.0, %v773
        %775 = vmatmul.bf16.gmra.mxu0 %v570
        %v776 = vpop.f32.mrf.mxu0
        %v777 = vadd.f32 0.0, %v776
        %v778 = vpop.f32.mrf.mxu0
        %v779 = vadd.f32 0.0, %v778
        %780 = vdwg.mxu0
        %v797 = vunpack.c.l.b16 %v457
        %v798 = vunpack.c.l.b16 %v458
        %v799 = vunpack.c.l.b16 %v459
        %v800 = vunpack.c.l.b16 %v460
        %v801 = vunpack.c.l.b16 %v461
        %v802 = vunpack.c.l.b16 %v462
        %v803 = vunpack.c.l.b16 %v463
        %v804 = vunpack.c.l.b16 %v464
        %v805 = vunpack.c.l.b16 %v465
        %v806 = vunpack.c.l.b16 %v466
        %v807 = vunpack.c.l.b16 %v467
        %v808 = vunpack.c.l.b16 %v468
        %v809 = vunpack.c.l.b16 %v469
        %v810 = vunpack.c.l.b16 %v470
        %v811 = vunpack.c.l.b16 %v471
        %v812 = vunpack.c.l.b16 %v472
        %v813 = vpack.c.b16 %v798, %v797
        %v814 = vpack.c.b16 %v800, %v799
        %v815 = vpack.c.b16 %v802, %v801
        %v816 = vpack.c.b16 %v804, %v803
        %v817 = vpack.c.b16 %v806, %v805
        %v818 = vpack.c.b16 %v808, %v807
        %v819 = vpack.c.b16 %v810, %v809
        %v820 = vpack.c.b16 %v812, %v811
        %v827 = vunpack.c.l.b16 %v473
        %v828 = vunpack.c.h.b16 %v473
        %v829 = vunpack.c.l.b16 %v474
        %v830 = vunpack.c.h.b16 %v474
        %v831 = vunpack.c.l.b16 %v475
        %v832 = vunpack.c.h.b16 %v475
        %v833 = vunpack.c.l.b16 %v476
        %v834 = vunpack.c.h.b16 %v476
        %v835 = vunpack.c.l.b16 %v477
        %v836 = vunpack.c.h.b16 %v477
        %v837 = vunpack.c.l.b16 %v478
        %v838 = vunpack.c.h.b16 %v478
        %v839 = vpack.c.b16 %v831, %v827
        %v840 = vpack.c.b16 %v832, %v828
        %v841 = vpack.c.b16 %v833, %v829
        %v842 = vpack.c.b16 %v834, %v830
        %v843 = vpack.c.b16 %v835, %v835
        %v844 = vpack.c.b16 %v836, %v836
        %v845 = vpack.c.b16 %v837, %v837
        %v846 = vpack.c.b16 %v838, %v838
        %vm851 = vcmask 138240
        %v853 = vsel %vm851, %v813, 0
        %v856 = vsel %vm851, %v814, 0
        %v859 = vsel %vm851, %v815, 0
        %v862 = vsel %vm851, %v816, 0
        %v865 = vsel %vm851, %v817, 0
        %v868 = vsel %vm851, %v818, 0
        %v871 = vsel %vm851, %v819, 0
        %v874 = vsel %vm851, %v820, 0
        %vm876 = vcmask 1040384
        %v877 = vsel 0, 4294967295, 65535
        %v878 = vsel %vm876, %v877, 0
        %v880 = vand.u32 %v843, %v878
        %v883 = vand.u32 %v844, %v878
        %v886 = vand.u32 %v845, %v878
        %v889 = vand.u32 %v846, %v878
        %891 = vmatpush.bf16.msra.mxu0 0
        %892 = vmatpush.bf16.msra.mxu0 0
        %893 = vmatpush.bf16.msra.mxu0 0
        %894 = vmatpush.bf16.msra.mxu0 0
        %895 = vmatpush.bf16.msra.mxu0 0
        %896 = vmatpush.bf16.msra.mxu0 0
        %897 = vmatpush.bf16.msra.mxu0 %v880
        %898 = vmatpush.bf16.msra.mxu0 %v839
        %899 = vmatmul.bf16.gmra.mxu0 %v853
        %v900 = vpop.f32.mrf.mxu0
        %v901 = vadd.f32 %v595, %v900
        %v902 = vpop.f32.mrf.mxu0
        %v903 = vadd.f32 %v597, %v902
        %904 = vmatmul.bf16.gmra.mxu0 %v856
        %v905 = vpop.f32.mrf.mxu0
        %v906 = vadd.f32 %v600, %v905
        %v907 = vpop.f32.mrf.mxu0
        %v908 = vadd.f32 %v602, %v907
        %909 = vmatmul.bf16.gmra.mxu0 %v859
        %v910 = vpop.f32.mrf.mxu0
        %v911 = vadd.f32 %v605, %v910
        %v912 = vpop.f32.mrf.mxu0
        %v913 = vadd.f32 %v607, %v912
        %914 = vmatmul.bf16.gmra.mxu0 %v862
        %v915 = vpop.f32.mrf.mxu0
        %v916 = vadd.f32 %v610, %v915
        %v917 = vpop.f32.mrf.mxu0
        %v918 = vadd.f32 %v612, %v917
        %919 = vmatmul.bf16.gmra.mxu0 %v865
        %v920 = vpop.f32.mrf.mxu0
        %v921 = vadd.f32 %v615, %v920
        %v922 = vpop.f32.mrf.mxu0
        %v923 = vadd.f32 %v617, %v922
        %924 = vmatmul.bf16.gmra.mxu0 %v868
        %v925 = vpop.f32.mrf.mxu0
        %v926 = vadd.f32 %v620, %v925
        %v927 = vpop.f32.mrf.mxu0
        %v928 = vadd.f32 %v622, %v927
        %929 = vmatmul.bf16.gmra.mxu0 %v871
        %v930 = vpop.f32.mrf.mxu0
        %v931 = vadd.f32 %v625, %v930
        %v932 = vpop.f32.mrf.mxu0
        %v933 = vadd.f32 %v627, %v932
        %934 = vmatmul.bf16.gmra.mxu0 %v874
        %v935 = vpop.f32.mrf.mxu0
        %v936 = vadd.f32 %v630, %v935
        %v937 = vpop.f32.mrf.mxu0
        %v938 = vadd.f32 %v632, %v937
        %939 = vdwg.mxu0
        %940 = vmatpush.bf16.msra.mxu0 0
        %941 = vmatpush.bf16.msra.mxu0 0
        %942 = vmatpush.bf16.msra.mxu0 0
        %943 = vmatpush.bf16.msra.mxu0 0
        %944 = vmatpush.bf16.msra.mxu0 0
        %945 = vmatpush.bf16.msra.mxu0 0
        %946 = vmatpush.bf16.msra.mxu0 %v883
        %947 = vmatpush.bf16.msra.mxu0 %v840
        %948 = vmatmul.bf16.gmra.mxu0 %v853
        %v949 = vpop.f32.mrf.mxu0
        %v950 = vadd.f32 %v644, %v949
        %v951 = vpop.f32.mrf.mxu0
        %v952 = vadd.f32 %v646, %v951
        %953 = vmatmul.bf16.gmra.mxu0 %v856
        %v954 = vpop.f32.mrf.mxu0
        %v955 = vadd.f32 %v649, %v954
        %v956 = vpop.f32.mrf.mxu0
        %v957 = vadd.f32 %v651, %v956
        %958 = vmatmul.bf16.gmra.mxu0 %v859
        %v959 = vpop.f32.mrf.mxu0
        %v960 = vadd.f32 %v654, %v959
        %v961 = vpop.f32.mrf.mxu0
        %v962 = vadd.f32 %v656, %v961
        %963 = vmatmul.bf16.gmra.mxu0 %v862
        %v964 = vpop.f32.mrf.mxu0
        %v965 = vadd.f32 %v659, %v964
        %v966 = vpop.f32.mrf.mxu0
        %v967 = vadd.f32 %v661, %v966
        %968 = vmatmul.bf16.gmra.mxu0 %v865
        %v969 = vpop.f32.mrf.mxu0
        %v970 = vadd.f32 %v664, %v969
        %v971 = vpop.f32.mrf.mxu0
        %v972 = vadd.f32 %v666, %v971
        %973 = vmatmul.bf16.gmra.mxu0 %v868
        %v974 = vpop.f32.mrf.mxu0
        %v975 = vadd.f32 %v669, %v974
        %v976 = vpop.f32.mrf.mxu0
        %v977 = vadd.f32 %v671, %v976
        %978 = vmatmul.bf16.gmra.mxu0 %v871
        %v979 = vpop.f32.mrf.mxu0
        %v980 = vadd.f32 %v674, %v979
        %v981 = vpop.f32.mrf.mxu0
        %v982 = vadd.f32 %v676, %v981
        %983 = vmatmul.bf16.gmra.mxu0 %v874
        %v984 = vpop.f32.mrf.mxu0
        %v985 = vadd.f32 %v679, %v984
        %v986 = vpop.f32.mrf.mxu0
        %v987 = vadd.f32 %v681, %v986
        %988 = vdwg.mxu0
        %989 = vmatpush.bf16.msra.mxu0 0
        %990 = vmatpush.bf16.msra.mxu0 0
        %991 = vmatpush.bf16.msra.mxu0 0
        %992 = vmatpush.bf16.msra.mxu0 0
        %993 = vmatpush.bf16.msra.mxu0 0
        %994 = vmatpush.bf16.msra.mxu0 0
        %995 = vmatpush.bf16.msra.mxu0 %v886
        %996 = vmatpush.bf16.msra.mxu0 %v841
        %997 = vmatmul.bf16.gmra.mxu0 %v853
        %v998 = vpop.f32.mrf.mxu0
        %v999 = vadd.f32 %v693, %v998
        %v1000 = vpop.f32.mrf.mxu0
        %v1001 = vadd.f32 %v695, %v1000
        %1002 = vmatmul.bf16.gmra.mxu0 %v856
        %v1003 = vpop.f32.mrf.mxu0
        %v1004 = vadd.f32 %v698, %v1003
        %v1005 = vpop.f32.mrf.mxu0
        %v1006 = vadd.f32 %v700, %v1005
        %1007 = vmatmul.bf16.gmra.mxu0 %v859
        %v1008 = vpop.f32.mrf.mxu0
        %v1009 = vadd.f32 %v703, %v1008
        %v1010 = vpop.f32.mrf.mxu0
        %v1011 = vadd.f32 %v705, %v1010
        %1012 = vmatmul.bf16.gmra.mxu0 %v862
        %v1013 = vpop.f32.mrf.mxu0
        %v1014 = vadd.f32 %v708, %v1013
        %v1015 = vpop.f32.mrf.mxu0
        %v1016 = vadd.f32 %v710, %v1015
        %1017 = vmatmul.bf16.gmra.mxu0 %v865
        %v1018 = vpop.f32.mrf.mxu0
        %v1019 = vadd.f32 %v713, %v1018
        %v1020 = vpop.f32.mrf.mxu0
        %v1021 = vadd.f32 %v715, %v1020
        %1022 = vmatmul.bf16.gmra.mxu0 %v868
        %v1023 = vpop.f32.mrf.mxu0
        %v1024 = vadd.f32 %v718, %v1023
        %v1025 = vpop.f32.mrf.mxu0
        %v1026 = vadd.f32 %v720, %v1025
        %1027 = vmatmul.bf16.gmra.mxu0 %v871
        %v1028 = vpop.f32.mrf.mxu0
        %v1029 = vadd.f32 %v723, %v1028
        %v1030 = vpop.f32.mrf.mxu0
        %v1031 = vadd.f32 %v725, %v1030
        %1032 = vmatmul.bf16.gmra.mxu0 %v874
        %v1033 = vpop.f32.mrf.mxu0
        %v1034 = vadd.f32 %v728, %v1033
        %v1035 = vpop.f32.mrf.mxu0
        %v1036 = vadd.f32 %v730, %v1035
        %1037 = vdwg.mxu0
        %1038 = vmatpush.bf16.msra.mxu0 0
        %1039 = vmatpush.bf16.msra.mxu0 0
        %1040 = vmatpush.bf16.msra.mxu0 0
        %1041 = vmatpush.bf16.msra.mxu0 0
        %1042 = vmatpush.bf16.msra.mxu0 0
        %1043 = vmatpush.bf16.msra.mxu0 0
        %1044 = vmatpush.bf16.msra.mxu0 %v889
        %1045 = vmatpush.bf16.msra.mxu0 %v842
        %1046 = vmatmul.bf16.gmra.mxu0 %v853
        %v1047 = vpop.f32.mrf.mxu0
        %v1048 = vadd.f32 %v742, %v1047
        %v1049 = vpop.f32.mrf.mxu0
        %v1050 = vadd.f32 %v744, %v1049
        %1051 = vmatmul.bf16.gmra.mxu0 %v856
        %v1052 = vpop.f32.mrf.mxu0
        %v1053 = vadd.f32 %v747, %v1052
        %v1054 = vpop.f32.mrf.mxu0
        %v1055 = vadd.f32 %v749, %v1054
        %1056 = vmatmul.bf16.gmra.mxu0 %v859
        %v1057 = vpop.f32.mrf.mxu0
        %v1058 = vadd.f32 %v752, %v1057
        %v1059 = vpop.f32.mrf.mxu0
        %v1060 = vadd.f32 %v754, %v1059
        %1061 = vmatmul.bf16.gmra.mxu0 %v862
        %v1062 = vpop.f32.mrf.mxu0
        %v1063 = vadd.f32 %v757, %v1062
        %v1064 = vpop.f32.mrf.mxu0
        %v1065 = vadd.f32 %v759, %v1064
        %1066 = vmatmul.bf16.gmra.mxu0 %v865
        %v1067 = vpop.f32.mrf.mxu0
        %v1068 = vadd.f32 %v762, %v1067
        %v1069 = vpop.f32.mrf.mxu0
        %v1070 = vadd.f32 %v764, %v1069
        %1071 = vmatmul.bf16.gmra.mxu0 %v868
        %v1072 = vpop.f32.mrf.mxu0
        %v1073 = vadd.f32 %v767, %v1072
        %v1074 = vpop.f32.mrf.mxu0
        %v1075 = vadd.f32 %v769, %v1074
        %1076 = vmatmul.bf16.gmra.mxu0 %v871
        %v1077 = vpop.f32.mrf.mxu0
        %v1078 = vadd.f32 %v772, %v1077
        %v1079 = vpop.f32.mrf.mxu0
        %v1080 = vadd.f32 %v774, %v1079
        %1081 = vmatmul.bf16.gmra.mxu0 %v874
        %v1082 = vpop.f32.mrf.mxu0
        %v1083 = vadd.f32 %v777, %v1082
        %v1084 = vpop.f32.mrf.mxu0
        %v1085 = vadd.f32 %v779, %v1084
        %1086 = vdwg.mxu0
        %v1087 = vld [vmem:[%s4] sm:$0xf]
        %v1089 = vperm.slane %v1087, 0
        %v1090 = vperm.slane %v1087, 1
        %v1091 = vperm.slane %v1087, 2
        %v1092 = vperm.slane %v1087, 3
        %v1097 = vadd.f32 %v901, %v1089
        %v1098 = vadd.f32 %v950, %v1090
        %v1099 = vadd.f32 %v999, %v1091
        %v1100 = vadd.f32 %v1048, %v1092
        %v1101 = vadd.f32 %v903, %v1089
        %v1102 = vadd.f32 %v952, %v1090
        %v1103 = vadd.f32 %v1001, %v1091
        %v1104 = vadd.f32 %v1050, %v1092
        %v1105 = vadd.f32 %v906, %v1089
        %v1106 = vadd.f32 %v955, %v1090
        %v1107 = vadd.f32 %v1004, %v1091
        %v1108 = vadd.f32 %v1053, %v1092
        %v1109 = vadd.f32 %v908, %v1089
        %v1110 = vadd.f32 %v957, %v1090
        %v1111 = vadd.f32 %v1006, %v1091
        %v1112 = vadd.f32 %v1055, %v1092
        %v1113 = vadd.f32 %v911, %v1089
        %v1114 = vadd.f32 %v960, %v1090
        %v1115 = vadd.f32 %v1009, %v1091
        %v1116 = vadd.f32 %v1058, %v1092
        %v1117 = vadd.f32 %v913, %v1089
        %v1118 = vadd.f32 %v962, %v1090
        %v1119 = vadd.f32 %v1011, %v1091
        %v1120 = vadd.f32 %v1060, %v1092
        %v1121 = vadd.f32 %v916, %v1089
        %v1122 = vadd.f32 %v965, %v1090
        %v1123 = vadd.f32 %v1014, %v1091
        %v1124 = vadd.f32 %v1063, %v1092
        %v1125 = vadd.f32 %v918, %v1089
        %v1126 = vadd.f32 %v967, %v1090
        %v1127 = vadd.f32 %v1016, %v1091
        %v1128 = vadd.f32 %v1065, %v1092
        %v1129 = vadd.f32 %v921, %v1089
        %v1130 = vadd.f32 %v970, %v1090
        %v1131 = vadd.f32 %v1019, %v1091
        %v1132 = vadd.f32 %v1068, %v1092
        %v1133 = vadd.f32 %v923, %v1089
        %v1134 = vadd.f32 %v972, %v1090
        %v1135 = vadd.f32 %v1021, %v1091
        %v1136 = vadd.f32 %v1070, %v1092
        %v1137 = vadd.f32 %v926, %v1089
        %v1138 = vadd.f32 %v975, %v1090
        %v1139 = vadd.f32 %v1024, %v1091
        %v1140 = vadd.f32 %v1073, %v1092
        %v1141 = vadd.f32 %v928, %v1089
        %v1142 = vadd.f32 %v977, %v1090
        %v1143 = vadd.f32 %v1026, %v1091
        %v1144 = vadd.f32 %v1075, %v1092
        %v1145 = vadd.f32 %v931, %v1089
        %v1146 = vadd.f32 %v980, %v1090
        %v1147 = vadd.f32 %v1029, %v1091
        %v1148 = vadd.f32 %v1078, %v1092
        %v1149 = vadd.f32 %v933, %v1089
        %v1150 = vadd.f32 %v982, %v1090
        %v1151 = vadd.f32 %v1031, %v1091
        %v1152 = vadd.f32 %v1080, %v1092
        %v1153 = vadd.f32 %v936, %v1089
        %v1154 = vadd.f32 %v985, %v1090
        %v1155 = vadd.f32 %v1034, %v1091
        %v1156 = vadd.f32 %v1083, %v1092
        %v1157 = vadd.f32 %v938, %v1089
        %v1158 = vadd.f32 %v987, %v1090
        %v1159 = vadd.f32 %v1036, %v1091
        %v1160 = vadd.f32 %v1085, %v1092
        %v1161 = vmax.f32 %v1097, 0.0
        %v1162 = vmax.f32 %v1098, 0.0
        %v1163 = vmax.f32 %v1099, 0.0
        %v1164 = vmax.f32 %v1100, 0.0
        %v1165 = vmax.f32 %v1101, 0.0
        %v1166 = vmax.f32 %v1102, 0.0
        %v1167 = vmax.f32 %v1103, 0.0
        %v1168 = vmax.f32 %v1104, 0.0
        %v1169 = vmax.f32 %v1105, 0.0
        %v1170 = vmax.f32 %v1106, 0.0
        %v1171 = vmax.f32 %v1107, 0.0
        %v1172 = vmax.f32 %v1108, 0.0
        %v1173 = vmax.f32 %v1109, 0.0
        %v1174 = vmax.f32 %v1110, 0.0
        %v1175 = vmax.f32 %v1111, 0.0
        %v1176 = vmax.f32 %v1112, 0.0
        %v1177 = vmax.f32 %v1113, 0.0
        %v1178 = vmax.f32 %v1114, 0.0
        %v1179 = vmax.f32 %v1115, 0.0
        %v1180 = vmax.f32 %v1116, 0.0
        %v1181 = vmax.f32 %v1117, 0.0
        %v1182 = vmax.f32 %v1118, 0.0
        %v1183 = vmax.f32 %v1119, 0.0
        %v1184 = vmax.f32 %v1120, 0.0
        %v1185 = vmax.f32 %v1121, 0.0
        %v1186 = vmax.f32 %v1122, 0.0
        %v1187 = vmax.f32 %v1123, 0.0
        %v1188 = vmax.f32 %v1124, 0.0
        %v1189 = vmax.f32 %v1125, 0.0
        %v1190 = vmax.f32 %v1126, 0.0
        %v1191 = vmax.f32 %v1127, 0.0
        %v1192 = vmax.f32 %v1128, 0.0
        %v1193 = vmax.f32 %v1129, 0.0
        %v1194 = vmax.f32 %v1130, 0.0
        %v1195 = vmax.f32 %v1131, 0.0
        %v1196 = vmax.f32 %v1132, 0.0
        %v1197 = vmax.f32 %v1133, 0.0
        %v1198 = vmax.f32 %v1134, 0.0
        %v1199 = vmax.f32 %v1135, 0.0
        %v1200 = vmax.f32 %v1136, 0.0
        %v1201 = vmax.f32 %v1137, 0.0
        %v1202 = vmax.f32 %v1138, 0.0
        %v1203 = vmax.f32 %v1139, 0.0
        %v1204 = vmax.f32 %v1140, 0.0
        %v1205 = vmax.f32 %v1141, 0.0
        %v1206 = vmax.f32 %v1142, 0.0
        %v1207 = vmax.f32 %v1143, 0.0
        %v1208 = vmax.f32 %v1144, 0.0
        %v1209 = vmax.f32 %v1145, 0.0
        %v1210 = vmax.f32 %v1146, 0.0
        %v1211 = vmax.f32 %v1147, 0.0
        %v1212 = vmax.f32 %v1148, 0.0
        %v1213 = vmax.f32 %v1149, 0.0
        %v1214 = vmax.f32 %v1150, 0.0
        %v1215 = vmax.f32 %v1151, 0.0
        %v1216 = vmax.f32 %v1152, 0.0
        %v1217 = vmax.f32 %v1153, 0.0
        %v1218 = vmax.f32 %v1154, 0.0
        %v1219 = vmax.f32 %v1155, 0.0
        %v1220 = vmax.f32 %v1156, 0.0
        %v1221 = vmax.f32 %v1157, 0.0
        %v1222 = vmax.f32 %v1158, 0.0
        %v1223 = vmax.f32 %v1159, 0.0
        %v1224 = vmax.f32 %v1160, 0.0
        %v1225 = vpack.c.bf16 %v1162, %v1161
        %v1226 = vpack.c.bf16 %v1164, %v1163
        %v1227 = vpack.c.bf16 %v1166, %v1165
        %v1228 = vpack.c.bf16 %v1168, %v1167
        %v1229 = vpack.c.bf16 %v1170, %v1169
        %v1230 = vpack.c.bf16 %v1172, %v1171
        %v1231 = vpack.c.bf16 %v1174, %v1173
        %v1232 = vpack.c.bf16 %v1176, %v1175
        %v1233 = vpack.c.bf16 %v1178, %v1177
        %v1234 = vpack.c.bf16 %v1180, %v1179
        %v1235 = vpack.c.bf16 %v1182, %v1181
        %v1236 = vpack.c.bf16 %v1184, %v1183
        %v1237 = vpack.c.bf16 %v1186, %v1185
        %v1238 = vpack.c.bf16 %v1188, %v1187
        %v1239 = vpack.c.bf16 %v1190, %v1189
        %v1240 = vpack.c.bf16 %v1192, %v1191
        %v1241 = vpack.c.bf16 %v1194, %v1193
        %v1242 = vpack.c.bf16 %v1196, %v1195
        %v1243 = vpack.c.bf16 %v1198, %v1197
        %v1244 = vpack.c.bf16 %v1200, %v1199
        %v1245 = vpack.c.bf16 %v1202, %v1201
        %v1246 = vpack.c.bf16 %v1204, %v1203
        %v1247 = vpack.c.bf16 %v1206, %v1205
        %v1248 = vpack.c.bf16 %v1208, %v1207
        %v1249 = vpack.c.bf16 %v1210, %v1209
        %v1250 = vpack.c.bf16 %v1212, %v1211
        %v1251 = vpack.c.bf16 %v1214, %v1213
        %v1252 = vpack.c.bf16 %v1216, %v1215
        %v1253 = vpack.c.bf16 %v1218, %v1217
        %v1254 = vpack.c.bf16 %v1220, %v1219
        %v1255 = vpack.c.bf16 %v1222, %v1221
        %v1256 = vpack.c.bf16 %v1224, %v1223
        %v1257 = vld [vmem:[%s5] sm:$0xff]
        %v1258 = vld [vmem:[%s5 + $0x8] sm:$0xff]
        %v1259 = vld [vmem:[%s5 + $0x10] sm:$0xff]
        %v1260 = vld [vmem:[%s5 + $0x18] sm:$0xff]
        %v1261 = vld [vmem:[%s5 + $0x20] sm:$0xff]
        %v1262 = vld [vmem:[%s5 + $0x28] sm:$0xff]
        %v1263 = vld [vmem:[%s5 + $0x30] sm:$0xff]
        %v1264 = vld [vmem:[%s5 + $0x38] sm:$0xff]
        %v1265 = vld [vmem:[%s5 + $0x40] sm:$0xff]
        %v1266 = vld [vmem:[%s5 + $0x48] sm:$0xff]
        %v1267 = vld [vmem:[%s5 + $0x50] sm:$0xff]
        %v1268 = vld [vmem:[%s5 + $0x58] sm:$0xff]
        %v1269 = vld [vmem:[%s5 + $0x60] sm:$0xff]
        %v1270 = vld [vmem:[%s5 + $0x68] sm:$0xff]
        %v1271 = vld [vmem:[%s5 + $0x70] sm:$0xff]
        %v1272 = vld [vmem:[%s5 + $0x78] sm:$0xff]
        %v1273 = vld [vmem:[%s5 + $0x80] sm:$0xff]
        %v1274 = vld [vmem:[%s5 + $0x88] sm:$0xff]
        %v1275 = vld [vmem:[%s5 + $0x90] sm:$0xff]
        %v1276 = vld [vmem:[%s5 + $0x98] sm:$0xff]
        %v1277 = vld [vmem:[%s5 + $0xa0] sm:$0xff]
        %v1278 = vld [vmem:[%s5 + $0xa8] sm:$0xff]
        %v1279 = vld [vmem:[%s5 + $0xb0] sm:$0xff]
        %v1280 = vld [vmem:[%s5 + $0xb8] sm:$0xff]
        %v1281 = vld [vmem:[%s5 + $0xc0] sm:$0xff]
        %v1282 = vld [vmem:[%s5 + $0xc8] sm:$0xff]
        %v1283 = vld [vmem:[%s5 + $0xd0] sm:$0xff]
        %v1284 = vld [vmem:[%s5 + $0xd8] sm:$0xff]
        %v1285 = vld [vmem:[%s5 + $0xe0] sm:$0xff]
        %v1286 = vld [vmem:[%s5 + $0xe8] sm:$0xff]
        %v1287 = vld [vmem:[%s5 + $0xf0] sm:$0xff]
        %v1288 = vld [vmem:[%s5 + $0xf8] sm:$0xff]
        %v1289 = vld [vmem:[%s6] sm:$0x3]
        %v1291 = vperm.slane %v1289, 0
        %v1292 = vperm.slane %v1289, 1
        %v1311 = vunpack.c.l.b16 %v1225
        %v1312 = vunpack.c.h.b16 %v1225
        %v1313 = vunpack.c.l.b16 %v1227
        %v1314 = vunpack.c.h.b16 %v1227
        %v1315 = vunpack.c.l.b16 %v1229
        %v1316 = vunpack.c.h.b16 %v1229
        %v1317 = vunpack.c.l.b16 %v1231
        %v1318 = vunpack.c.h.b16 %v1231
        %v1319 = vunpack.c.l.b16 %v1233
        %v1320 = vunpack.c.h.b16 %v1233
        %v1321 = vunpack.c.l.b16 %v1235
        %v1322 = vunpack.c.h.b16 %v1235
        %v1323 = vunpack.c.l.b16 %v1237
        %v1324 = vunpack.c.h.b16 %v1237
        %v1325 = vunpack.c.l.b16 %v1239
        %v1326 = vunpack.c.h.b16 %v1239
        %v1327 = vunpack.c.l.b16 %v1241
        %v1328 = vunpack.c.h.b16 %v1241
        %v1329 = vunpack.c.l.b16 %v1243
        %v1330 = vunpack.c.h.b16 %v1243
        %v1331 = vunpack.c.l.b16 %v1245
        %v1332 = vunpack.c.h.b16 %v1245
        %v1333 = vunpack.c.l.b16 %v1247
        %v1334 = vunpack.c.h.b16 %v1247
        %v1335 = vunpack.c.l.b16 %v1249
        %v1336 = vunpack.c.h.b16 %v1249
        %v1337 = vunpack.c.l.b16 %v1251
        %v1338 = vunpack.c.h.b16 %v1251
        %v1339 = vunpack.c.l.b16 %v1253
        %v1340 = vunpack.c.h.b16 %v1253
        %v1341 = vunpack.c.l.b16 %v1255
        %v1342 = vunpack.c.h.b16 %v1255
        %v1343 = vpack.c.b16 %v1313, %v1311
        %v1344 = vpack.c.b16 %v1314, %v1312
        %v1345 = vpack.c.b16 %v1317, %v1315
        %v1346 = vpack.c.b16 %v1318, %v1316
        %v1347 = vpack.c.b16 %v1321, %v1319
        %v1348 = vpack.c.b16 %v1322, %v1320
        %v1349 = vpack.c.b16 %v1325, %v1323
        %v1350 = vpack.c.b16 %v1326, %v1324
        %v1351 = vpack.c.b16 %v1329, %v1327
        %v1352 = vpack.c.b16 %v1330, %v1328
        %v1353 = vpack.c.b16 %v1333, %v1331
        %v1354 = vpack.c.b16 %v1334, %v1332
        %v1355 = vpack.c.b16 %v1337, %v1335
        %v1356 = vpack.c.b16 %v1338, %v1336
        %v1357 = vpack.c.b16 %v1341, %v1339
        %v1358 = vpack.c.b16 %v1342, %v1340
        %v1407 = vunpack.c.l.b16 %v1257
        %v1408 = vunpack.c.h.b16 %v1257
        %v1409 = vunpack.c.l.b16 %v1258
        %v1410 = vunpack.c.h.b16 %v1258
        %v1411 = vunpack.c.l.b16 %v1259
        %v1412 = vunpack.c.h.b16 %v1259
        %v1413 = vunpack.c.l.b16 %v1260
        %v1414 = vunpack.c.h.b16 %v1260
        %v1415 = vunpack.c.l.b16 %v1261
        %v1416 = vunpack.c.h.b16 %v1261
        %v1417 = vunpack.c.l.b16 %v1262
        %v1418 = vunpack.c.h.b16 %v1262
        %v1419 = vunpack.c.l.b16 %v1263
        %v1420 = vunpack.c.h.b16 %v1263
        %v1421 = vunpack.c.l.b16 %v1264
        %v1422 = vunpack.c.h.b16 %v1264
        %v1423 = vunpack.c.l.b16 %v1265
        %v1424 = vunpack.c.h.b16 %v1265
        %v1425 = vunpack.c.l.b16 %v1266
        %v1426 = vunpack.c.h.b16 %v1266
        %v1427 = vunpack.c.l.b16 %v1267
        %v1428 = vunpack.c.h.b16 %v1267
        %v1429 = vunpack.c.l.b16 %v1268
        %v1430 = vunpack.c.h.b16 %v1268
        %v1431 = vunpack.c.l.b16 %v1269
        %v1432 = vunpack.c.h.b16 %v1269
        %v1433 = vunpack.c.l.b16 %v1270
        %v1434 = vunpack.c.h.b16 %v1270
        %v1435 = vunpack.c.l.b16 %v1271
        %v1436 = vunpack.c.h.b16 %v1271
        %v1437 = vunpack.c.l.b16 %v1272
        %v1438 = vunpack.c.h.b16 %v1272
        %v1439 = vunpack.c.l.b16 %v1273
        %v1440 = vunpack.c.h.b16 %v1273
        %v1441 = vunpack.c.l.b16 %v1274
        %v1442 = vunpack.c.h.b16 %v1274
        %v1443 = vunpack.c.l.b16 %v1275
        %v1444 = vunpack.c.h.b16 %v1275
        %v1445 = vunpack.c.l.b16 %v1276
        %v1446 = vunpack.c.h.b16 %v1276
        %v1447 = vunpack.c.l.b16 %v1277
        %v1448 = vunpack.c.h.b16 %v1277
        %v1449 = vunpack.c.l.b16 %v1278
        %v1450 = vunpack.c.h.b16 %v1278
        %v1451 = vunpack.c.l.b16 %v1279
        %v1452 = vunpack.c.h.b16 %v1279
        %v1453 = vunpack.c.l.b16 %v1280
        %v1454 = vunpack.c.h.b16 %v1280
        %v1455 = vunpack.c.l.b16 %v1281
        %v1456 = vunpack.c.h.b16 %v1281
        %v1457 = vunpack.c.l.b16 %v1282
        %v1458 = vunpack.c.h.b16 %v1282
        %v1459 = vunpack.c.l.b16 %v1283
        %v1460 = vunpack.c.h.b16 %v1283
        %v1461 = vunpack.c.l.b16 %v1284
        %v1462 = vunpack.c.h.b16 %v1284
        %v1463 = vunpack.c.l.b16 %v1285
        %v1464 = vunpack.c.h.b16 %v1285
        %v1465 = vunpack.c.l.b16 %v1286
        %v1466 = vunpack.c.h.b16 %v1286
        %v1467 = vunpack.c.l.b16 %v1287
        %v1468 = vunpack.c.h.b16 %v1287
        %v1469 = vunpack.c.l.b16 %v1288
        %v1470 = vunpack.c.h.b16 %v1288
        %v1471 = vpack.c.b16 %v1409, %v1407
        %v1472 = vpack.c.b16 %v1410, %v1408
        %v1473 = vpack.c.b16 %v1413, %v1411
        %v1474 = vpack.c.b16 %v1414, %v1412
        %v1475 = vpack.c.b16 %v1417, %v1415
        %v1476 = vpack.c.b16 %v1418, %v1416
        %v1477 = vpack.c.b16 %v1421, %v1419
        %v1478 = vpack.c.b16 %v1422, %v1420
        %v1479 = vpack.c.b16 %v1425, %v1423
        %v1480 = vpack.c.b16 %v1426, %v1424
        %v1481 = vpack.c.b16 %v1429, %v1427
        %v1482 = vpack.c.b16 %v1430, %v1428
        %v1483 = vpack.c.b16 %v1433, %v1431
        %v1484 = vpack.c.b16 %v1434, %v1432
        %v1485 = vpack.c.b16 %v1437, %v1435
        %v1486 = vpack.c.b16 %v1438, %v1436
        %v1487 = vpack.c.b16 %v1441, %v1439
        %v1488 = vpack.c.b16 %v1442, %v1440
        %v1489 = vpack.c.b16 %v1445, %v1443
        %v1490 = vpack.c.b16 %v1446, %v1444
        %v1491 = vpack.c.b16 %v1449, %v1447
        %v1492 = vpack.c.b16 %v1450, %v1448
        %v1493 = vpack.c.b16 %v1453, %v1451
        %v1494 = vpack.c.b16 %v1454, %v1452
        %v1495 = vpack.c.b16 %v1457, %v1455
        %v1496 = vpack.c.b16 %v1458, %v1456
        %v1497 = vpack.c.b16 %v1461, %v1459
        %v1498 = vpack.c.b16 %v1462, %v1460
        %v1499 = vpack.c.b16 %v1465, %v1463
        %v1500 = vpack.c.b16 %v1466, %v1464
        %v1501 = vpack.c.b16 %v1469, %v1467
        %v1502 = vpack.c.b16 %v1470, %v1468
        %1535 = vmatpush.bf16.msra.mxu0 %v1485
        %1536 = vmatpush.bf16.msra.mxu0 %v1483
        %1537 = vmatpush.bf16.msra.mxu0 %v1481
        %1538 = vmatpush.bf16.msra.mxu0 %v1479
        %1539 = vmatpush.bf16.msra.mxu0 %v1477
        %1540 = vmatpush.bf16.msra.mxu0 %v1475
        %1541 = vmatpush.bf16.msra.mxu0 %v1473
        %1542 = vmatpush.bf16.msra.mxu0 %v1471
        %1543 = vmatmul.bf16.gmra.mxu0 %v1343
        %v1544 = vpop.f32.mrf.mxu0
        %v1545 = vadd.f32 %v1291, %v1544
        %v1546 = vpop.f32.mrf.mxu0
        %v1547 = vadd.f32 %v1291, %v1546
        %1548 = vmatmul.bf16.gmra.mxu0 %v1345
        %v1549 = vpop.f32.mrf.mxu0
        %v1550 = vadd.f32 %v1291, %v1549
        %v1551 = vpop.f32.mrf.mxu0
        %v1552 = vadd.f32 %v1291, %v1551
        %1553 = vmatmul.bf16.gmra.mxu0 %v1347
        %v1554 = vpop.f32.mrf.mxu0
        %v1555 = vadd.f32 %v1291, %v1554
        %v1556 = vpop.f32.mrf.mxu0
        %v1557 = vadd.f32 %v1291, %v1556
        %1558 = vmatmul.bf16.gmra.mxu0 %v1349
        %v1559 = vpop.f32.mrf.mxu0
        %v1560 = vadd.f32 %v1291, %v1559
        %v1561 = vpop.f32.mrf.mxu0
        %v1562 = vadd.f32 %v1291, %v1561
        %1563 = vmatmul.bf16.gmra.mxu0 %v1351
        %v1564 = vpop.f32.mrf.mxu0
        %v1565 = vadd.f32 %v1291, %v1564
        %v1566 = vpop.f32.mrf.mxu0
        %v1567 = vadd.f32 %v1291, %v1566
        %1568 = vmatmul.bf16.gmra.mxu0 %v1353
        %v1569 = vpop.f32.mrf.mxu0
        %v1570 = vadd.f32 %v1291, %v1569
        %v1571 = vpop.f32.mrf.mxu0
        %v1572 = vadd.f32 %v1291, %v1571
        %1573 = vmatmul.bf16.gmra.mxu0 %v1355
        %v1574 = vpop.f32.mrf.mxu0
        %v1575 = vadd.f32 %v1291, %v1574
        %v1576 = vpop.f32.mrf.mxu0
        %v1577 = vadd.f32 %v1291, %v1576
        %1578 = vmatmul.bf16.gmra.mxu0 %v1357
        %v1579 = vpop.f32.mrf.mxu0
        %v1580 = vadd.f32 %v1291, %v1579
        %v1581 = vpop.f32.mrf.mxu0
        %v1582 = vadd.f32 %v1291, %v1581
        %1583 = vdwg.mxu0
        %1584 = vmatpush.bf16.msra.mxu0 %v1501
        %1585 = vmatpush.bf16.msra.mxu0 %v1499
        %1586 = vmatpush.bf16.msra.mxu0 %v1497
        %1587 = vmatpush.bf16.msra.mxu0 %v1495
        %1588 = vmatpush.bf16.msra.mxu0 %v1493
        %1589 = vmatpush.bf16.msra.mxu0 %v1491
        %1590 = vmatpush.bf16.msra.mxu0 %v1489
        %1591 = vmatpush.bf16.msra.mxu0 %v1487
        %1592 = vmatmul.bf16.gmra.mxu0 %v1344
        %v1593 = vpop.f32.mrf.mxu0
        %v1594 = vadd.f32 %v1545, %v1593
        %v1595 = vpop.f32.mrf.mxu0
        %v1596 = vadd.f32 %v1547, %v1595
        %1597 = vmatmul.bf16.gmra.mxu0 %v1346
        %v1598 = vpop.f32.mrf.mxu0
        %v1599 = vadd.f32 %v1550, %v1598
        %v1600 = vpop.f32.mrf.mxu0
        %v1601 = vadd.f32 %v1552, %v1600
        %1602 = vmatmul.bf16.gmra.mxu0 %v1348
        %v1603 = vpop.f32.mrf.mxu0
        %v1604 = vadd.f32 %v1555, %v1603
        %v1605 = vpop.f32.mrf.mxu0
        %v1606 = vadd.f32 %v1557, %v1605
        %1607 = vmatmul.bf16.gmra.mxu0 %v1350
        %v1608 = vpop.f32.mrf.mxu0
        %v1609 = vadd.f32 %v1560, %v1608
        %v1610 = vpop.f32.mrf.mxu0
        %v1611 = vadd.f32 %v1562, %v1610
        %1612 = vmatmul.bf16.gmra.mxu0 %v1352
        %v1613 = vpop.f32.mrf.mxu0
        %v1614 = vadd.f32 %v1565, %v1613
        %v1615 = vpop.f32.mrf.mxu0
        %v1616 = vadd.f32 %v1567, %v1615
        %1617 = vmatmul.bf16.gmra.mxu0 %v1354
        %v1618 = vpop.f32.mrf.mxu0
        %v1619 = vadd.f32 %v1570, %v1618
        %v1620 = vpop.f32.mrf.mxu0
        %v1621 = vadd.f32 %v1572, %v1620
        %1622 = vmatmul.bf16.gmra.mxu0 %v1356
        %v1623 = vpop.f32.mrf.mxu0
        %v1624 = vadd.f32 %v1575, %v1623
        %v1625 = vpop.f32.mrf.mxu0
        %v1626 = vadd.f32 %v1577, %v1625
        %1627 = vmatmul.bf16.gmra.mxu0 %v1358
        %v1628 = vpop.f32.mrf.mxu0
        %v1629 = vadd.f32 %v1580, %v1628
        %v1630 = vpop.f32.mrf.mxu0
        %v1631 = vadd.f32 %v1582, %v1630
        %1632 = vdwg.mxu0
        %1633 = vmatpush.bf16.msra.mxu0 %v1486
        %1634 = vmatpush.bf16.msra.mxu0 %v1484
        %1635 = vmatpush.bf16.msra.mxu0 %v1482
        %1636 = vmatpush.bf16.msra.mxu0 %v1480
        %1637 = vmatpush.bf16.msra.mxu0 %v1478
        %1638 = vmatpush.bf16.msra.mxu0 %v1476
        %1639 = vmatpush.bf16.msra.mxu0 %v1474
        %1640 = vmatpush.bf16.msra.mxu0 %v1472
        %1641 = vmatmul.bf16.gmra.mxu0 %v1343
        %v1642 = vpop.f32.mrf.mxu0
        %v1643 = vadd.f32 %v1292, %v1642
        %v1644 = vpop.f32.mrf.mxu0
        %v1645 = vadd.f32 %v1292, %v1644
        %1646 = vmatmul.bf16.gmra.mxu0 %v1345
        %v1647 = vpop.f32.mrf.mxu0
        %v1648 = vadd.f32 %v1292, %v1647
        %v1649 = vpop.f32.mrf.mxu0
        %v1650 = vadd.f32 %v1292, %v1649
        %1651 = vmatmul.bf16.gmra.mxu0 %v1347
        %v1652 = vpop.f32.mrf.mxu0
        %v1653 = vadd.f32 %v1292, %v1652
        %v1654 = vpop.f32.mrf.mxu0
        %v1655 = vadd.f32 %v1292, %v1654
        %1656 = vmatmul.bf16.gmra.mxu0 %v1349
        %v1657 = vpop.f32.mrf.mxu0
        %v1658 = vadd.f32 %v1292, %v1657
        %v1659 = vpop.f32.mrf.mxu0
        %v1660 = vadd.f32 %v1292, %v1659
        %1661 = vmatmul.bf16.gmra.mxu0 %v1351
        %v1662 = vpop.f32.mrf.mxu0
        %v1663 = vadd.f32 %v1292, %v1662
        %v1664 = vpop.f32.mrf.mxu0
        %v1665 = vadd.f32 %v1292, %v1664
        %1666 = vmatmul.bf16.gmra.mxu0 %v1353
        %v1667 = vpop.f32.mrf.mxu0
        %v1668 = vadd.f32 %v1292, %v1667
        %v1669 = vpop.f32.mrf.mxu0
        %v1670 = vadd.f32 %v1292, %v1669
        %1671 = vmatmul.bf16.gmra.mxu0 %v1355
        %v1672 = vpop.f32.mrf.mxu0
        %v1673 = vadd.f32 %v1292, %v1672
        %v1674 = vpop.f32.mrf.mxu0
        %v1675 = vadd.f32 %v1292, %v1674
        %1676 = vmatmul.bf16.gmra.mxu0 %v1357
        %v1677 = vpop.f32.mrf.mxu0
        %v1678 = vadd.f32 %v1292, %v1677
        %v1679 = vpop.f32.mrf.mxu0
        %v1680 = vadd.f32 %v1292, %v1679
        %1681 = vdwg.mxu0
        %1682 = vmatpush.bf16.msra.mxu0 %v1502
        %1683 = vmatpush.bf16.msra.mxu0 %v1500
        %1684 = vmatpush.bf16.msra.mxu0 %v1498
        %1685 = vmatpush.bf16.msra.mxu0 %v1496
        %1686 = vmatpush.bf16.msra.mxu0 %v1494
        %1687 = vmatpush.bf16.msra.mxu0 %v1492
        %1688 = vmatpush.bf16.msra.mxu0 %v1490
        %1689 = vmatpush.bf16.msra.mxu0 %v1488
        %1690 = vmatmul.bf16.gmra.mxu0 %v1344
        %v1691 = vpop.f32.mrf.mxu0
        %v1692 = vadd.f32 %v1643, %v1691
        %v1693 = vpop.f32.mrf.mxu0
        %v1694 = vadd.f32 %v1645, %v1693
        %1695 = vmatmul.bf16.gmra.mxu0 %v1346
        %v1696 = vpop.f32.mrf.mxu0
        %v1697 = vadd.f32 %v1648, %v1696
        %v1698 = vpop.f32.mrf.mxu0
        %v1699 = vadd.f32 %v1650, %v1698
        %1700 = vmatmul.bf16.gmra.mxu0 %v1348
        %v1701 = vpop.f32.mrf.mxu0
        %v1702 = vadd.f32 %v1653, %v1701
        %v1703 = vpop.f32.mrf.mxu0
        %v1704 = vadd.f32 %v1655, %v1703
        %1705 = vmatmul.bf16.gmra.mxu0 %v1350
        %v1706 = vpop.f32.mrf.mxu0
        %v1707 = vadd.f32 %v1658, %v1706
        %v1708 = vpop.f32.mrf.mxu0
        %v1709 = vadd.f32 %v1660, %v1708
        %1710 = vmatmul.bf16.gmra.mxu0 %v1352
        %v1711 = vpop.f32.mrf.mxu0
        %v1712 = vadd.f32 %v1663, %v1711
        %v1713 = vpop.f32.mrf.mxu0
        %v1714 = vadd.f32 %v1665, %v1713
        %1715 = vmatmul.bf16.gmra.mxu0 %v1354
        %v1716 = vpop.f32.mrf.mxu0
        %v1717 = vadd.f32 %v1668, %v1716
        %v1718 = vpop.f32.mrf.mxu0
        %v1719 = vadd.f32 %v1670, %v1718
        %1720 = vmatmul.bf16.gmra.mxu0 %v1356
        %v1721 = vpop.f32.mrf.mxu0
        %v1722 = vadd.f32 %v1673, %v1721
        %v1723 = vpop.f32.mrf.mxu0
        %v1724 = vadd.f32 %v1675, %v1723
        %1725 = vmatmul.bf16.gmra.mxu0 %v1358
        %v1726 = vpop.f32.mrf.mxu0
        %v1727 = vadd.f32 %v1678, %v1726
        %v1728 = vpop.f32.mrf.mxu0
        %v1729 = vadd.f32 %v1680, %v1728
        %1730 = vdwg.mxu0
        %v1731 = vmax.f32 %v1594, 0.0
        %v1732 = vmax.f32 %v1692, 0.0
        %v1733 = vmax.f32 %v1596, 0.0
        %v1734 = vmax.f32 %v1694, 0.0
        %v1735 = vmax.f32 %v1599, 0.0
        %v1736 = vmax.f32 %v1697, 0.0
        %v1737 = vmax.f32 %v1601, 0.0
        %v1738 = vmax.f32 %v1699, 0.0
        %v1739 = vmax.f32 %v1604, 0.0
        %v1740 = vmax.f32 %v1702, 0.0
        %v1741 = vmax.f32 %v1606, 0.0
        %v1742 = vmax.f32 %v1704, 0.0
        %v1743 = vmax.f32 %v1609, 0.0
        %v1744 = vmax.f32 %v1707, 0.0
        %v1745 = vmax.f32 %v1611, 0.0
        %v1746 = vmax.f32 %v1709, 0.0
        %v1747 = vmax.f32 %v1614, 0.0
        %v1748 = vmax.f32 %v1712, 0.0
        %v1749 = vmax.f32 %v1616, 0.0
        %v1750 = vmax.f32 %v1714, 0.0
        %v1751 = vmax.f32 %v1619, 0.0
        %v1752 = vmax.f32 %v1717, 0.0
        %v1753 = vmax.f32 %v1621, 0.0
        %v1754 = vmax.f32 %v1719, 0.0
        %v1755 = vmax.f32 %v1624, 0.0
        %v1756 = vmax.f32 %v1722, 0.0
        %v1757 = vmax.f32 %v1626, 0.0
        %v1758 = vmax.f32 %v1724, 0.0
        %v1759 = vmax.f32 %v1629, 0.0
        %v1760 = vmax.f32 %v1727, 0.0
        %v1761 = vmax.f32 %v1631, 0.0
        %v1762 = vmax.f32 %v1729, 0.0
        %v1763 = vpack.c.bf16 %v1733, %v1731
        %v1764 = vpack.c.bf16 %v1734, %v1732
        %v1765 = vpack.c.bf16 %v1737, %v1735
        %v1766 = vpack.c.bf16 %v1738, %v1736
        %v1767 = vpack.c.bf16 %v1741, %v1739
        %v1768 = vpack.c.bf16 %v1742, %v1740
        %v1769 = vpack.c.bf16 %v1745, %v1743
        %v1770 = vpack.c.bf16 %v1746, %v1744
        %v1771 = vpack.c.bf16 %v1749, %v1747
        %v1772 = vpack.c.bf16 %v1750, %v1748
        %v1773 = vpack.c.bf16 %v1753, %v1751
        %v1774 = vpack.c.bf16 %v1754, %v1752
        %v1775 = vpack.c.bf16 %v1757, %v1755
        %v1776 = vpack.c.bf16 %v1758, %v1756
        %v1777 = vpack.c.bf16 %v1761, %v1759
        %v1778 = vpack.c.bf16 %v1762, %v1760
        %v1779 = vld [vmem:[%s7] sm:$0xff]
        %v1780 = vld [vmem:[%s7 + $0x8] sm:$0xff]
        %v1781 = vld [vmem:[%s7 + $0x10] sm:$0xff]
        %v1782 = vld [vmem:[%s7 + $0x18] sm:$0xff]
        %v1783 = vld [vmem:[%s7 + $0x20] sm:$0xff]
        %v1784 = vld [vmem:[%s7 + $0x28] sm:$0xff]
        %v1785 = vld [vmem:[%s7 + $0x30] sm:$0xff]
        %v1786 = vld [vmem:[%s7 + $0x38] sm:$0xff]
        %v1787 = vld [vmem:[%s7 + $0x40] sm:$0xff]
        %v1788 = vld [vmem:[%s7 + $0x48] sm:$0xff]
        %v1789 = vld [vmem:[%s7 + $0x50] sm:$0xff]
        %v1790 = vld [vmem:[%s7 + $0x58] sm:$0xff]
        %v1791 = vld [vmem:[%s7 + $0x60] sm:$0xff]
        %v1792 = vld [vmem:[%s7 + $0x68] sm:$0xff]
        %v1793 = vld [vmem:[%s7 + $0x70] sm:$0xff]
        %v1794 = vld [vmem:[%s7 + $0x78] sm:$0xff]
        %v1795 = vld [vmem:[%s7 + $0x80] sm:$0xff]
        %v1796 = vld [vmem:[%s7 + $0x88] sm:$0xff]
        %v1797 = vld [vmem:[%s7 + $0x90] sm:$0xff]
        %v1798 = vld [vmem:[%s7 + $0x98] sm:$0xff]
        %v1799 = vld [vmem:[%s7 + $0xa0] sm:$0xff]
        %v1800 = vld [vmem:[%s7 + $0xa8] sm:$0xff]
        %v1801 = vld [vmem:[%s7 + $0xb0] sm:$0xff]
        %v1802 = vld [vmem:[%s7 + $0xb8] sm:$0xff]
        %v1803 = vld [vmem:[%s7 + $0xc0] sm:$0xff]
        %v1804 = vld [vmem:[%s7 + $0xc8] sm:$0xff]
        %v1805 = vld [vmem:[%s7 + $0xd0] sm:$0xff]
        %v1806 = vld [vmem:[%s7 + $0xd8] sm:$0xff]
        %v1807 = vld [vmem:[%s7 + $0xe0] sm:$0xff]
        %v1808 = vld [vmem:[%s7 + $0xe8] sm:$0xff]
        %v1809 = vld [vmem:[%s7 + $0xf0] sm:$0xff]
        %v1810 = vld [vmem:[%s7 + $0xf8] sm:$0xff]
        %v1811 = vld [vmem:[%s8] sm:$0x3]
        %v1813 = vperm.slane %v1811, 0
        %v1814 = vperm.slane %v1811, 1
        %v1833 = vunpack.c.l.b16 %v1226
        %v1834 = vunpack.c.h.b16 %v1226
        %v1835 = vunpack.c.l.b16 %v1228
        %v1836 = vunpack.c.h.b16 %v1228
        %v1837 = vunpack.c.l.b16 %v1230
        %v1838 = vunpack.c.h.b16 %v1230
        %v1839 = vunpack.c.l.b16 %v1232
        %v1840 = vunpack.c.h.b16 %v1232
        %v1841 = vunpack.c.l.b16 %v1234
        %v1842 = vunpack.c.h.b16 %v1234
        %v1843 = vunpack.c.l.b16 %v1236
        %v1844 = vunpack.c.h.b16 %v1236
        %v1845 = vunpack.c.l.b16 %v1238
        %v1846 = vunpack.c.h.b16 %v1238
        %v1847 = vunpack.c.l.b16 %v1240
        %v1848 = vunpack.c.h.b16 %v1240
        %v1849 = vunpack.c.l.b16 %v1242
        %v1850 = vunpack.c.h.b16 %v1242
        %v1851 = vunpack.c.l.b16 %v1244
        %v1852 = vunpack.c.h.b16 %v1244
        %v1853 = vunpack.c.l.b16 %v1246
        %v1854 = vunpack.c.h.b16 %v1246
        %v1855 = vunpack.c.l.b16 %v1248
        %v1856 = vunpack.c.h.b16 %v1248
        %v1857 = vunpack.c.l.b16 %v1250
        %v1858 = vunpack.c.h.b16 %v1250
        %v1859 = vunpack.c.l.b16 %v1252
        %v1860 = vunpack.c.h.b16 %v1252
        %v1861 = vunpack.c.l.b16 %v1254
        %v1862 = vunpack.c.h.b16 %v1254
        %v1863 = vunpack.c.l.b16 %v1256
        %v1864 = vunpack.c.h.b16 %v1256
        %v1865 = vpack.c.b16 %v1835, %v1833
        %v1866 = vpack.c.b16 %v1836, %v1834
        %v1867 = vpack.c.b16 %v1839, %v1837
        %v1868 = vpack.c.b16 %v1840, %v1838
        %v1869 = vpack.c.b16 %v1843, %v1841
        %v1870 = vpack.c.b16 %v1844, %v1842
        %v1871 = vpack.c.b16 %v1847, %v1845
        %v1872 = vpack.c.b16 %v1848, %v1846
        %v1873 = vpack.c.b16 %v1851, %v1849
        %v1874 = vpack.c.b16 %v1852, %v1850
        %v1875 = vpack.c.b16 %v1855, %v1853
        %v1876 = vpack.c.b16 %v1856, %v1854
        %v1877 = vpack.c.b16 %v1859, %v1857
        %v1878 = vpack.c.b16 %v1860, %v1858
        %v1879 = vpack.c.b16 %v1863, %v1861
        %v1880 = vpack.c.b16 %v1864, %v1862
        %v1929 = vunpack.c.l.b16 %v1779
        %v1930 = vunpack.c.h.b16 %v1779
        %v1931 = vunpack.c.l.b16 %v1780
        %v1932 = vunpack.c.h.b16 %v1780
        %v1933 = vunpack.c.l.b16 %v1781
        %v1934 = vunpack.c.h.b16 %v1781
        %v1935 = vunpack.c.l.b16 %v1782
        %v1936 = vunpack.c.h.b16 %v1782
        %v1937 = vunpack.c.l.b16 %v1783
        %v1938 = vunpack.c.h.b16 %v1783
        %v1939 = vunpack.c.l.b16 %v1784
        %v1940 = vunpack.c.h.b16 %v1784
        %v1941 = vunpack.c.l.b16 %v1785
        %v1942 = vunpack.c.h.b16 %v1785
        %v1943 = vunpack.c.l.b16 %v1786
        %v1944 = vunpack.c.h.b16 %v1786
        %v1945 = vunpack.c.l.b16 %v1787
        %v1946 = vunpack.c.h.b16 %v1787
        %v1947 = vunpack.c.l.b16 %v1788
        %v1948 = vunpack.c.h.b16 %v1788
        %v1949 = vunpack.c.l.b16 %v1789
        %v1950 = vunpack.c.h.b16 %v1789
        %v1951 = vunpack.c.l.b16 %v1790
        %v1952 = vunpack.c.h.b16 %v1790
        %v1953 = vunpack.c.l.b16 %v1791
        %v1954 = vunpack.c.h.b16 %v1791
        %v1955 = vunpack.c.l.b16 %v1792
        %v1956 = vunpack.c.h.b16 %v1792
        %v1957 = vunpack.c.l.b16 %v1793
        %v1958 = vunpack.c.h.b16 %v1793
        %v1959 = vunpack.c.l.b16 %v1794
        %v1960 = vunpack.c.h.b16 %v1794
        %v1961 = vunpack.c.l.b16 %v1795
        %v1962 = vunpack.c.h.b16 %v1795
        %v1963 = vunpack.c.l.b16 %v1796
        %v1964 = vunpack.c.h.b16 %v1796
        %v1965 = vunpack.c.l.b16 %v1797
        %v1966 = vunpack.c.h.b16 %v1797
        %v1967 = vunpack.c.l.b16 %v1798
        %v1968 = vunpack.c.h.b16 %v1798
        %v1969 = vunpack.c.l.b16 %v1799
        %v1970 = vunpack.c.h.b16 %v1799
        %v1971 = vunpack.c.l.b16 %v1800
        %v1972 = vunpack.c.h.b16 %v1800
        %v1973 = vunpack.c.l.b16 %v1801
        %v1974 = vunpack.c.h.b16 %v1801
        %v1975 = vunpack.c.l.b16 %v1802
        %v1976 = vunpack.c.h.b16 %v1802
        %v1977 = vunpack.c.l.b16 %v1803
        %v1978 = vunpack.c.h.b16 %v1803
        %v1979 = vunpack.c.l.b16 %v1804
        %v1980 = vunpack.c.h.b16 %v1804
        %v1981 = vunpack.c.l.b16 %v1805
        %v1982 = vunpack.c.h.b16 %v1805
        %v1983 = vunpack.c.l.b16 %v1806
        %v1984 = vunpack.c.h.b16 %v1806
        %v1985 = vunpack.c.l.b16 %v1807
        %v1986 = vunpack.c.h.b16 %v1807
        %v1987 = vunpack.c.l.b16 %v1808
        %v1988 = vunpack.c.h.b16 %v1808
        %v1989 = vunpack.c.l.b16 %v1809
        %v1990 = vunpack.c.h.b16 %v1809
        %v1991 = vunpack.c.l.b16 %v1810
        %v1992 = vunpack.c.h.b16 %v1810
        %v1993 = vpack.c.b16 %v1931, %v1929
        %v1994 = vpack.c.b16 %v1932, %v1930
        %v1995 = vpack.c.b16 %v1935, %v1933
        %v1996 = vpack.c.b16 %v1936, %v1934
        %v1997 = vpack.c.b16 %v1939, %v1937
        %v1998 = vpack.c.b16 %v1940, %v1938
        %v1999 = vpack.c.b16 %v1943, %v1941
        %v2000 = vpack.c.b16 %v1944, %v1942
        %v2001 = vpack.c.b16 %v1947, %v1945
        %v2002 = vpack.c.b16 %v1948, %v1946
        %v2003 = vpack.c.b16 %v1951, %v1949
        %v2004 = vpack.c.b16 %v1952, %v1950
        %v2005 = vpack.c.b16 %v1955, %v1953
        %v2006 = vpack.c.b16 %v1956, %v1954
        %v2007 = vpack.c.b16 %v1959, %v1957
        %v2008 = vpack.c.b16 %v1960, %v1958
        %v2009 = vpack.c.b16 %v1963, %v1961
        %v2010 = vpack.c.b16 %v1964, %v1962
        %v2011 = vpack.c.b16 %v1967, %v1965
        %v2012 = vpack.c.b16 %v1968, %v1966
        %v2013 = vpack.c.b16 %v1971, %v1969
        %v2014 = vpack.c.b16 %v1972, %v1970
        %v2015 = vpack.c.b16 %v1975, %v1973
        %v2016 = vpack.c.b16 %v1976, %v1974
        %v2017 = vpack.c.b16 %v1979, %v1977
        %v2018 = vpack.c.b16 %v1980, %v1978
        %v2019 = vpack.c.b16 %v1983, %v1981
        %v2020 = vpack.c.b16 %v1984, %v1982
        %v2021 = vpack.c.b16 %v1987, %v1985
        %v2022 = vpack.c.b16 %v1988, %v1986
        %v2023 = vpack.c.b16 %v1991, %v1989
        %v2024 = vpack.c.b16 %v1992, %v1990
        %2057 = vmatpush.bf16.msra.mxu0 %v2007
        %2058 = vmatpush.bf16.msra.mxu0 %v2005
        %2059 = vmatpush.bf16.msra.mxu0 %v2003
        %2060 = vmatpush.bf16.msra.mxu0 %v2001
        %2061 = vmatpush.bf16.msra.mxu0 %v1999
        %2062 = vmatpush.bf16.msra.mxu0 %v1997
        %2063 = vmatpush.bf16.msra.mxu0 %v1995
        %2064 = vmatpush.bf16.msra.mxu0 %v1993
        %2065 = vmatmul.bf16.gmra.mxu0 %v1865
        %v2066 = vpop.f32.mrf.mxu0
        %v2067 = vadd.f32 %v1813, %v2066
        %v2068 = vpop.f32.mrf.mxu0
        %v2069 = vadd.f32 %v1813, %v2068
        %2070 = vmatmul.bf16.gmra.mxu0 %v1867
        %v2071 = vpop.f32.mrf.mxu0
        %v2072 = vadd.f32 %v1813, %v2071
        %v2073 = vpop.f32.mrf.mxu0
        %v2074 = vadd.f32 %v1813, %v2073
        %2075 = vmatmul.bf16.gmra.mxu0 %v1869
        %v2076 = vpop.f32.mrf.mxu0
        %v2077 = vadd.f32 %v1813, %v2076
        %v2078 = vpop.f32.mrf.mxu0
        %v2079 = vadd.f32 %v1813, %v2078
        %2080 = vmatmul.bf16.gmra.mxu0 %v1871
        %v2081 = vpop.f32.mrf.mxu0
        %v2082 = vadd.f32 %v1813, %v2081
        %v2083 = vpop.f32.mrf.mxu0
        %v2084 = vadd.f32 %v1813, %v2083
        %2085 = vmatmul.bf16.gmra.mxu0 %v1873
        %v2086 = vpop.f32.mrf.mxu0
        %v2087 = vadd.f32 %v1813, %v2086
        %v2088 = vpop.f32.mrf.mxu0
        %v2089 = vadd.f32 %v1813, %v2088
        %2090 = vmatmul.bf16.gmra.mxu0 %v1875
        %v2091 = vpop.f32.mrf.mxu0
        %v2092 = vadd.f32 %v1813, %v2091
        %v2093 = vpop.f32.mrf.mxu0
        %v2094 = vadd.f32 %v1813, %v2093
        %2095 = vmatmul.bf16.gmra.mxu0 %v1877
        %v2096 = vpop.f32.mrf.mxu0
        %v2097 = vadd.f32 %v1813, %v2096
        %v2098 = vpop.f32.mrf.mxu0
        %v2099 = vadd.f32 %v1813, %v2098
        %2100 = vmatmul.bf16.gmra.mxu0 %v1879
        %v2101 = vpop.f32.mrf.mxu0
        %v2102 = vadd.f32 %v1813, %v2101
        %v2103 = vpop.f32.mrf.mxu0
        %v2104 = vadd.f32 %v1813, %v2103
        %2105 = vdwg.mxu0
        %2106 = vmatpush.bf16.msra.mxu0 %v2023
        %2107 = vmatpush.bf16.msra.mxu0 %v2021
        %2108 = vmatpush.bf16.msra.mxu0 %v2019
        %2109 = vmatpush.bf16.msra.mxu0 %v2017
        %2110 = vmatpush.bf16.msra.mxu0 %v2015
        %2111 = vmatpush.bf16.msra.mxu0 %v2013
        %2112 = vmatpush.bf16.msra.mxu0 %v2011
        %2113 = vmatpush.bf16.msra.mxu0 %v2009
        %2114 = vmatmul.bf16.gmra.mxu0 %v1866
        %v2115 = vpop.f32.mrf.mxu0
        %v2116 = vadd.f32 %v2067, %v2115
        %v2117 = vpop.f32.mrf.mxu0
        %v2118 = vadd.f32 %v2069, %v2117
        %2119 = vmatmul.bf16.gmra.mxu0 %v1868
        %v2120 = vpop.f32.mrf.mxu0
        %v2121 = vadd.f32 %v2072, %v2120
        %v2122 = vpop.f32.mrf.mxu0
        %v2123 = vadd.f32 %v2074, %v2122
        %2124 = vmatmul.bf16.gmra.mxu0 %v1870
        %v2125 = vpop.f32.mrf.mxu0
        %v2126 = vadd.f32 %v2077, %v2125
        %v2127 = vpop.f32.mrf.mxu0
        %v2128 = vadd.f32 %v2079, %v2127
        %2129 = vmatmul.bf16.gmra.mxu0 %v1872
        %v2130 = vpop.f32.mrf.mxu0
        %v2131 = vadd.f32 %v2082, %v2130
        %v2132 = vpop.f32.mrf.mxu0
        %v2133 = vadd.f32 %v2084, %v2132
        %2134 = vmatmul.bf16.gmra.mxu0 %v1874
        %v2135 = vpop.f32.mrf.mxu0
        %v2136 = vadd.f32 %v2087, %v2135
        %v2137 = vpop.f32.mrf.mxu0
        %v2138 = vadd.f32 %v2089, %v2137
        %2139 = vmatmul.bf16.gmra.mxu0 %v1876
        %v2140 = vpop.f32.mrf.mxu0
        %v2141 = vadd.f32 %v2092, %v2140
        %v2142 = vpop.f32.mrf.mxu0
        %v2143 = vadd.f32 %v2094, %v2142
        %2144 = vmatmul.bf16.gmra.mxu0 %v1878
        %v2145 = vpop.f32.mrf.mxu0
        %v2146 = vadd.f32 %v2097, %v2145
        %v2147 = vpop.f32.mrf.mxu0
        %v2148 = vadd.f32 %v2099, %v2147
        %2149 = vmatmul.bf16.gmra.mxu0 %v1880
        %v2150 = vpop.f32.mrf.mxu0
        %v2151 = vadd.f32 %v2102, %v2150
        %v2152 = vpop.f32.mrf.mxu0
        %v2153 = vadd.f32 %v2104, %v2152
        %2154 = vdwg.mxu0
        %2155 = vmatpush.bf16.msra.mxu0 %v2008
        %2156 = vmatpush.bf16.msra.mxu0 %v2006
        %2157 = vmatpush.bf16.msra.mxu0 %v2004
        %2158 = vmatpush.bf16.msra.mxu0 %v2002
        %2159 = vmatpush.bf16.msra.mxu0 %v2000
        %2160 = vmatpush.bf16.msra.mxu0 %v1998
        %2161 = vmatpush.bf16.msra.mxu0 %v1996
        %2162 = vmatpush.bf16.msra.mxu0 %v1994
        %2163 = vmatmul.bf16.gmra.mxu0 %v1865
        %v2164 = vpop.f32.mrf.mxu0
        %v2165 = vadd.f32 %v1814, %v2164
        %v2166 = vpop.f32.mrf.mxu0
        %v2167 = vadd.f32 %v1814, %v2166
        %2168 = vmatmul.bf16.gmra.mxu0 %v1867
        %v2169 = vpop.f32.mrf.mxu0
        %v2170 = vadd.f32 %v1814, %v2169
        %v2171 = vpop.f32.mrf.mxu0
        %v2172 = vadd.f32 %v1814, %v2171
        %2173 = vmatmul.bf16.gmra.mxu0 %v1869
        %v2174 = vpop.f32.mrf.mxu0
        %v2175 = vadd.f32 %v1814, %v2174
        %v2176 = vpop.f32.mrf.mxu0
        %v2177 = vadd.f32 %v1814, %v2176
        %2178 = vmatmul.bf16.gmra.mxu0 %v1871
        %v2179 = vpop.f32.mrf.mxu0
        %v2180 = vadd.f32 %v1814, %v2179
        %v2181 = vpop.f32.mrf.mxu0
        %v2182 = vadd.f32 %v1814, %v2181
        %2183 = vmatmul.bf16.gmra.mxu0 %v1873
        %v2184 = vpop.f32.mrf.mxu0
        %v2185 = vadd.f32 %v1814, %v2184
        %v2186 = vpop.f32.mrf.mxu0
        %v2187 = vadd.f32 %v1814, %v2186
        %2188 = vmatmul.bf16.gmra.mxu0 %v1875
        %v2189 = vpop.f32.mrf.mxu0
        %v2190 = vadd.f32 %v1814, %v2189
        %v2191 = vpop.f32.mrf.mxu0
        %v2192 = vadd.f32 %v1814, %v2191
        %2193 = vmatmul.bf16.gmra.mxu0 %v1877
        %v2194 = vpop.f32.mrf.mxu0
        %v2195 = vadd.f32 %v1814, %v2194
        %v2196 = vpop.f32.mrf.mxu0
        %v2197 = vadd.f32 %v1814, %v2196
        %2198 = vmatmul.bf16.gmra.mxu0 %v1879
        %v2199 = vpop.f32.mrf.mxu0
        %v2200 = vadd.f32 %v1814, %v2199
        %v2201 = vpop.f32.mrf.mxu0
        %v2202 = vadd.f32 %v1814, %v2201
        %2203 = vdwg.mxu0
        %2204 = vmatpush.bf16.msra.mxu0 %v2024
        %2205 = vmatpush.bf16.msra.mxu0 %v2022
        %2206 = vmatpush.bf16.msra.mxu0 %v2020
        %2207 = vmatpush.bf16.msra.mxu0 %v2018
        %2208 = vmatpush.bf16.msra.mxu0 %v2016
        %2209 = vmatpush.bf16.msra.mxu0 %v2014
        %2210 = vmatpush.bf16.msra.mxu0 %v2012
        %2211 = vmatpush.bf16.msra.mxu0 %v2010
        %2212 = vmatmul.bf16.gmra.mxu0 %v1866
        %v2213 = vpop.f32.mrf.mxu0
        %v2214 = vadd.f32 %v2165, %v2213
        %v2215 = vpop.f32.mrf.mxu0
        %v2216 = vadd.f32 %v2167, %v2215
        %2217 = vmatmul.bf16.gmra.mxu0 %v1868
        %v2218 = vpop.f32.mrf.mxu0
        %v2219 = vadd.f32 %v2170, %v2218
        %v2220 = vpop.f32.mrf.mxu0
        %v2221 = vadd.f32 %v2172, %v2220
        %2222 = vmatmul.bf16.gmra.mxu0 %v1870
        %v2223 = vpop.f32.mrf.mxu0
        %v2224 = vadd.f32 %v2175, %v2223
        %v2225 = vpop.f32.mrf.mxu0
        %v2226 = vadd.f32 %v2177, %v2225
        %2227 = vmatmul.bf16.gmra.mxu0 %v1872
        %v2228 = vpop.f32.mrf.mxu0
        %v2229 = vadd.f32 %v2180, %v2228
        %v2230 = vpop.f32.mrf.mxu0
        %v2231 = vadd.f32 %v2182, %v2230
        %2232 = vmatmul.bf16.gmra.mxu0 %v1874
        %v2233 = vpop.f32.mrf.mxu0
        %v2234 = vadd.f32 %v2185, %v2233
        %v2235 = vpop.f32.mrf.mxu0
        %v2236 = vadd.f32 %v2187, %v2235
        %2237 = vmatmul.bf16.gmra.mxu0 %v1876
        %v2238 = vpop.f32.mrf.mxu0
        %v2239 = vadd.f32 %v2190, %v2238
        %v2240 = vpop.f32.mrf.mxu0
        %v2241 = vadd.f32 %v2192, %v2240
        %2242 = vmatmul.bf16.gmra.mxu0 %v1878
        %v2243 = vpop.f32.mrf.mxu0
        %v2244 = vadd.f32 %v2195, %v2243
        %v2245 = vpop.f32.mrf.mxu0
        %v2246 = vadd.f32 %v2197, %v2245
        %2247 = vmatmul.bf16.gmra.mxu0 %v1880
        %v2248 = vpop.f32.mrf.mxu0
        %v2249 = vadd.f32 %v2200, %v2248
        %v2250 = vpop.f32.mrf.mxu0
        %v2251 = vadd.f32 %v2202, %v2250
        %2252 = vdwg.mxu0
        %v2253 = vmax.f32 %v2116, 0.0
        %v2254 = vmax.f32 %v2214, 0.0
        %v2255 = vmax.f32 %v2118, 0.0
        %v2256 = vmax.f32 %v2216, 0.0
        %v2257 = vmax.f32 %v2121, 0.0
        %v2258 = vmax.f32 %v2219, 0.0
        %v2259 = vmax.f32 %v2123, 0.0
        %v2260 = vmax.f32 %v2221, 0.0
        %v2261 = vmax.f32 %v2126, 0.0
        %v2262 = vmax.f32 %v2224, 0.0
        %v2263 = vmax.f32 %v2128, 0.0
        %v2264 = vmax.f32 %v2226, 0.0
        %v2265 = vmax.f32 %v2131, 0.0
        %v2266 = vmax.f32 %v2229, 0.0
        %v2267 = vmax.f32 %v2133, 0.0
        %v2268 = vmax.f32 %v2231, 0.0
        %v2269 = vmax.f32 %v2136, 0.0
        %v2270 = vmax.f32 %v2234, 0.0
        %v2271 = vmax.f32 %v2138, 0.0
        %v2272 = vmax.f32 %v2236, 0.0
        %v2273 = vmax.f32 %v2141, 0.0
        %v2274 = vmax.f32 %v2239, 0.0
        %v2275 = vmax.f32 %v2143, 0.0
        %v2276 = vmax.f32 %v2241, 0.0
        %v2277 = vmax.f32 %v2146, 0.0
        %v2278 = vmax.f32 %v2244, 0.0
        %v2279 = vmax.f32 %v2148, 0.0
        %v2280 = vmax.f32 %v2246, 0.0
        %v2281 = vmax.f32 %v2151, 0.0
        %v2282 = vmax.f32 %v2249, 0.0
        %v2283 = vmax.f32 %v2153, 0.0
        %v2284 = vmax.f32 %v2251, 0.0
        %v2285 = vpack.c.bf16 %v2255, %v2253
        %v2286 = vpack.c.bf16 %v2256, %v2254
        %v2287 = vpack.c.bf16 %v2259, %v2257
        %v2288 = vpack.c.bf16 %v2260, %v2258
        %v2289 = vpack.c.bf16 %v2263, %v2261
        %v2290 = vpack.c.bf16 %v2264, %v2262
        %v2291 = vpack.c.bf16 %v2267, %v2265
        %v2292 = vpack.c.bf16 %v2268, %v2266
        %v2293 = vpack.c.bf16 %v2271, %v2269
        %v2294 = vpack.c.bf16 %v2272, %v2270
        %v2295 = vpack.c.bf16 %v2275, %v2273
        %v2296 = vpack.c.bf16 %v2276, %v2274
        %v2297 = vpack.c.bf16 %v2279, %v2277
        %v2298 = vpack.c.bf16 %v2280, %v2278
        %v2299 = vpack.c.bf16 %v2283, %v2281
        %v2300 = vpack.c.bf16 %v2284, %v2282
        %v2301 = vld [vmem:[%s9] sm:$0xf]
        %v2302 = vld [vmem:[%s9 + $0x4] sm:$0xf]
        %v2303 = vld [vmem:[%s9 + $0x8] sm:$0xf]
        %v2304 = vld [vmem:[%s9 + $0xc] sm:$0xf]
        %v2305 = vld [vmem:[%s9 + $0x10] sm:$0xf]
        %v2306 = vld [vmem:[%s9 + $0x14] sm:$0xf]
        %v2307 = vld [vmem:[%s9 + $0x18] sm:$0xf]
        %v2308 = vld [vmem:[%s9 + $0x1c] sm:$0xf]
        %v2309 = vld [vmem:[%s9 + $0x20] sm:$0xf]
        %v2310 = vld [vmem:[%s9 + $0x24] sm:$0xf]
        %v2311 = vld [vmem:[%s9 + $0x28] sm:$0xf]
        %v2312 = vld [vmem:[%s9 + $0x2c] sm:$0xf]
        %v2313 = vld [vmem:[%s9 + $0x30] sm:$0xf]
        %v2314 = vld [vmem:[%s9 + $0x34] sm:$0xf]
        %v2315 = vld [vmem:[%s9 + $0x38] sm:$0xf]
        %v2316 = vld [vmem:[%s9 + $0x3c] sm:$0xf]
        %v2317 = vld [vmem:[%s9 + $0x40] sm:$0xf]
        %v2318 = vld [vmem:[%s9 + $0x44] sm:$0xf]
        %v2319 = vld [vmem:[%s9 + $0x48] sm:$0xf]
        %v2320 = vld [vmem:[%s9 + $0x4c] sm:$0xf]
        %v2321 = vld [vmem:[%s9 + $0x50] sm:$0xf]
        %v2322 = vld [vmem:[%s9 + $0x54] sm:$0xf]
        %v2323 = vld [vmem:[%s9 + $0x58] sm:$0xf]
        %v2324 = vld [vmem:[%s9 + $0x5c] sm:$0xf]
        %v2325 = vld [vmem:[%s9 + $0x60] sm:$0xf]
        %v2326 = vld [vmem:[%s9 + $0x64] sm:$0xf]
        %v2327 = vld [vmem:[%s9 + $0x68] sm:$0xf]
        %v2328 = vld [vmem:[%s9 + $0x6c] sm:$0xf]
        %v2329 = vld [vmem:[%s9 + $0x70] sm:$0xf]
        %v2330 = vld [vmem:[%s9 + $0x74] sm:$0xf]
        %v2331 = vld [vmem:[%s9 + $0x78] sm:$0xf]
        %v2332 = vld [vmem:[%s9 + $0x7c] sm:$0xf]
        %v2333 = vld [vmem:[%s10] sm:$0xf]
        %v2334 = vld [vmem:[%s10 + $0x4] sm:$0xf]
        %v2335 = vld [vmem:[%s10 + $0x8] sm:$0xf]
        %v2336 = vld [vmem:[%s10 + $0xc] sm:$0xf]
        %v2337 = vld [vmem:[%s10 + $0x10] sm:$0xf]
        %v2338 = vld [vmem:[%s10 + $0x14] sm:$0xf]
        %v2339 = vld [vmem:[%s10 + $0x18] sm:$0xf]
        %v2340 = vld [vmem:[%s10 + $0x1c] sm:$0xf]
        %v2341 = vld [vmem:[%s10 + $0x20] sm:$0xf]
        %v2342 = vld [vmem:[%s10 + $0x24] sm:$0xf]
        %v2343 = vld [vmem:[%s10 + $0x28] sm:$0xf]
        %v2344 = vld [vmem:[%s10 + $0x2c] sm:$0xf]
        %v2345 = vld [vmem:[%s10 + $0x30] sm:$0xf]
        %v2346 = vld [vmem:[%s10 + $0x34] sm:$0xf]
        %v2347 = vld [vmem:[%s10 + $0x38] sm:$0xf]
        %v2348 = vld [vmem:[%s10 + $0x3c] sm:$0xf]
        %v2349 = vld [vmem:[%s10 + $0x40] sm:$0xf]
        %v2350 = vld [vmem:[%s10 + $0x44] sm:$0xf]
        %v2351 = vld [vmem:[%s10 + $0x48] sm:$0xf]
        %v2352 = vld [vmem:[%s10 + $0x4c] sm:$0xf]
        %v2353 = vld [vmem:[%s10 + $0x50] sm:$0xf]
        %v2354 = vld [vmem:[%s10 + $0x54] sm:$0xf]
        %v2355 = vld [vmem:[%s10 + $0x58] sm:$0xf]
        %v2356 = vld [vmem:[%s10 + $0x5c] sm:$0xf]
        %v2357 = vld [vmem:[%s10 + $0x60] sm:$0xf]
        %v2358 = vld [vmem:[%s10 + $0x64] sm:$0xf]
        %v2359 = vld [vmem:[%s10 + $0x68] sm:$0xf]
        %v2360 = vld [vmem:[%s10 + $0x6c] sm:$0xf]
        %v2361 = vld [vmem:[%s10 + $0x70] sm:$0xf]
        %v2362 = vld [vmem:[%s10 + $0x74] sm:$0xf]
        %v2363 = vld [vmem:[%s10 + $0x78] sm:$0xf]
        %v2364 = vld [vmem:[%s10 + $0x7c] sm:$0xf]
        %v2397 = vunpack.c.l.b16 %v2333
        %v2398 = vunpack.c.l.b16 %v2334
        %v2399 = vunpack.c.l.b16 %v2335
        %v2400 = vunpack.c.l.b16 %v2336
        %v2401 = vunpack.c.l.b16 %v2337
        %v2402 = vunpack.c.l.b16 %v2338
        %v2403 = vunpack.c.l.b16 %v2339
        %v2404 = vunpack.c.l.b16 %v2340
        %v2405 = vunpack.c.l.b16 %v2341
        %v2406 = vunpack.c.l.b16 %v2342
        %v2407 = vunpack.c.l.b16 %v2343
        %v2408 = vunpack.c.l.b16 %v2344
        %v2409 = vunpack.c.l.b16 %v2345
        %v2410 = vunpack.c.l.b16 %v2346
        %v2411 = vunpack.c.l.b16 %v2347
        %v2412 = vunpack.c.l.b16 %v2348
        %v2413 = vunpack.c.l.b16 %v2349
        %v2414 = vunpack.c.l.b16 %v2350
        %v2415 = vunpack.c.l.b16 %v2351
        %v2416 = vunpack.c.l.b16 %v2352
        %v2417 = vunpack.c.l.b16 %v2353
        %v2418 = vunpack.c.l.b16 %v2354
        %v2419 = vunpack.c.l.b16 %v2355
        %v2420 = vunpack.c.l.b16 %v2356
        %v2421 = vunpack.c.l.b16 %v2357
        %v2422 = vunpack.c.l.b16 %v2358
        %v2423 = vunpack.c.l.b16 %v2359
        %v2424 = vunpack.c.l.b16 %v2360
        %v2425 = vunpack.c.l.b16 %v2361
        %v2426 = vunpack.c.l.b16 %v2362
        %v2427 = vunpack.c.l.b16 %v2363
        %v2428 = vunpack.c.l.b16 %v2364
        %v2429 = vpack.c.b16 %v2398, %v2397
        %v2430 = vpack.c.b16 %v2400, %v2399
        %v2431 = vpack.c.b16 %v2402, %v2401
        %v2432 = vpack.c.b16 %v2404, %v2403
        %v2433 = vpack.c.b16 %v2406, %v2405
        %v2434 = vpack.c.b16 %v2408, %v2407
        %v2435 = vpack.c.b16 %v2410, %v2409
        %v2436 = vpack.c.b16 %v2412, %v2411
        %v2437 = vpack.c.b16 %v2414, %v2413
        %v2438 = vpack.c.b16 %v2416, %v2415
        %v2439 = vpack.c.b16 %v2418, %v2417
        %v2440 = vpack.c.b16 %v2420, %v2419
        %v2441 = vpack.c.b16 %v2422, %v2421
        %v2442 = vpack.c.b16 %v2424, %v2423
        %v2443 = vpack.c.b16 %v2426, %v2425
        %v2444 = vpack.c.b16 %v2428, %v2427
        %2461 = vmatpush.bf16.msra.mxu0 %v2436
        %2462 = vmatpush.bf16.msra.mxu0 %v2435
        %2463 = vmatpush.bf16.msra.mxu0 %v2434
        %2464 = vmatpush.bf16.msra.mxu0 %v2433
        %2465 = vmatpush.bf16.msra.mxu0 %v2432
        %2466 = vmatpush.bf16.msra.mxu0 %v2431
        %2467 = vmatpush.bf16.msra.mxu0 %v2430
        %2468 = vmatpush.bf16.msra.mxu0 %v2429
        %2469 = vmatmul.bf16.gmra.mxu0 %v2285
        %v2470 = vpop.f32.mrf.mxu0
        %v2471 = vadd.f32 0.0, %v2470
        %v2472 = vpop.f32.mrf.mxu0
        %v2473 = vadd.f32 0.0, %v2472
        %2474 = vmatmul.bf16.gmra.mxu0 %v2287
        %v2475 = vpop.f32.mrf.mxu0
        %v2476 = vadd.f32 0.0, %v2475
        %v2477 = vpop.f32.mrf.mxu0
        %v2478 = vadd.f32 0.0, %v2477
        %2479 = vmatmul.bf16.gmra.mxu0 %v2289
        %v2480 = vpop.f32.mrf.mxu0
        %v2481 = vadd.f32 0.0, %v2480
        %v2482 = vpop.f32.mrf.mxu0
        %v2483 = vadd.f32 0.0, %v2482
        %2484 = vmatmul.bf16.gmra.mxu0 %v2291
        %v2485 = vpop.f32.mrf.mxu0
        %v2486 = vadd.f32 0.0, %v2485
        %v2487 = vpop.f32.mrf.mxu0
        %v2488 = vadd.f32 0.0, %v2487
        %2489 = vmatmul.bf16.gmra.mxu0 %v2293
        %v2490 = vpop.f32.mrf.mxu0
        %v2491 = vadd.f32 0.0, %v2490
        %v2492 = vpop.f32.mrf.mxu0
        %v2493 = vadd.f32 0.0, %v2492
        %2494 = vmatmul.bf16.gmra.mxu0 %v2295
        %v2495 = vpop.f32.mrf.mxu0
        %v2496 = vadd.f32 0.0, %v2495
        %v2497 = vpop.f32.mrf.mxu0
        %v2498 = vadd.f32 0.0, %v2497
        %2499 = vmatmul.bf16.gmra.mxu0 %v2297
        %v2500 = vpop.f32.mrf.mxu0
        %v2501 = vadd.f32 0.0, %v2500
        %v2502 = vpop.f32.mrf.mxu0
        %v2503 = vadd.f32 0.0, %v2502
        %2504 = vmatmul.bf16.gmra.mxu0 %v2299
        %v2505 = vpop.f32.mrf.mxu0
        %v2506 = vadd.f32 0.0, %v2505
        %v2507 = vpop.f32.mrf.mxu0
        %v2508 = vadd.f32 0.0, %v2507
        %2509 = vdwg.mxu0
        %2510 = vmatpush.bf16.msra.mxu0 %v2444
        %2511 = vmatpush.bf16.msra.mxu0 %v2443
        %2512 = vmatpush.bf16.msra.mxu0 %v2442
        %2513 = vmatpush.bf16.msra.mxu0 %v2441
        %2514 = vmatpush.bf16.msra.mxu0 %v2440
        %2515 = vmatpush.bf16.msra.mxu0 %v2439
        %2516 = vmatpush.bf16.msra.mxu0 %v2438
        %2517 = vmatpush.bf16.msra.mxu0 %v2437
        %2518 = vmatmul.bf16.gmra.mxu0 %v2286
        %v2519 = vpop.f32.mrf.mxu0
        %v2520 = vadd.f32 %v2471, %v2519
        %v2521 = vpop.f32.mrf.mxu0
        %v2522 = vadd.f32 %v2473, %v2521
        %2523 = vmatmul.bf16.gmra.mxu0 %v2288
        %v2524 = vpop.f32.mrf.mxu0
        %v2525 = vadd.f32 %v2476, %v2524
        %v2526 = vpop.f32.mrf.mxu0
        %v2527 = vadd.f32 %v2478, %v2526
        %2528 = vmatmul.bf16.gmra.mxu0 %v2290
        %v2529 = vpop.f32.mrf.mxu0
        %v2530 = vadd.f32 %v2481, %v2529
        %v2531 = vpop.f32.mrf.mxu0
        %v2532 = vadd.f32 %v2483, %v2531
        %2533 = vmatmul.bf16.gmra.mxu0 %v2292
        %v2534 = vpop.f32.mrf.mxu0
        %v2535 = vadd.f32 %v2486, %v2534
        %v2536 = vpop.f32.mrf.mxu0
        %v2537 = vadd.f32 %v2488, %v2536
        %2538 = vmatmul.bf16.gmra.mxu0 %v2294
        %v2539 = vpop.f32.mrf.mxu0
        %v2540 = vadd.f32 %v2491, %v2539
        %v2541 = vpop.f32.mrf.mxu0
        %v2542 = vadd.f32 %v2493, %v2541
        %2543 = vmatmul.bf16.gmra.mxu0 %v2296
        %v2544 = vpop.f32.mrf.mxu0
        %v2545 = vadd.f32 %v2496, %v2544
        %v2546 = vpop.f32.mrf.mxu0
        %v2547 = vadd.f32 %v2498, %v2546
        %2548 = vmatmul.bf16.gmra.mxu0 %v2298
        %v2549 = vpop.f32.mrf.mxu0
        %v2550 = vadd.f32 %v2501, %v2549
        %v2551 = vpop.f32.mrf.mxu0
        %v2552 = vadd.f32 %v2503, %v2551
        %2553 = vmatmul.bf16.gmra.mxu0 %v2300
        %v2554 = vpop.f32.mrf.mxu0
        %v2555 = vadd.f32 %v2506, %v2554
        %v2556 = vpop.f32.mrf.mxu0
        %v2557 = vadd.f32 %v2508, %v2556
        %2558 = vdwg.mxu0
        %v2591 = vunpack.c.l.b16 %v2301
        %v2592 = vunpack.c.l.b16 %v2302
        %v2593 = vunpack.c.l.b16 %v2303
        %v2594 = vunpack.c.l.b16 %v2304
        %v2595 = vunpack.c.l.b16 %v2305
        %v2596 = vunpack.c.l.b16 %v2306
        %v2597 = vunpack.c.l.b16 %v2307
        %v2598 = vunpack.c.l.b16 %v2308
        %v2599 = vunpack.c.l.b16 %v2309
        %v2600 = vunpack.c.l.b16 %v2310
        %v2601 = vunpack.c.l.b16 %v2311
        %v2602 = vunpack.c.l.b16 %v2312
        %v2603 = vunpack.c.l.b16 %v2313
        %v2604 = vunpack.c.l.b16 %v2314
        %v2605 = vunpack.c.l.b16 %v2315
        %v2606 = vunpack.c.l.b16 %v2316
        %v2607 = vunpack.c.l.b16 %v2317
        %v2608 = vunpack.c.l.b16 %v2318
        %v2609 = vunpack.c.l.b16 %v2319
        %v2610 = vunpack.c.l.b16 %v2320
        %v2611 = vunpack.c.l.b16 %v2321
        %v2612 = vunpack.c.l.b16 %v2322
        %v2613 = vunpack.c.l.b16 %v2323
        %v2614 = vunpack.c.l.b16 %v2324
        %v2615 = vunpack.c.l.b16 %v2325
        %v2616 = vunpack.c.l.b16 %v2326
        %v2617 = vunpack.c.l.b16 %v2327
        %v2618 = vunpack.c.l.b16 %v2328
        %v2619 = vunpack.c.l.b16 %v2329
        %v2620 = vunpack.c.l.b16 %v2330
        %v2621 = vunpack.c.l.b16 %v2331
        %v2622 = vunpack.c.l.b16 %v2332
        %v2623 = vpack.c.b16 %v2592, %v2591
        %v2624 = vpack.c.b16 %v2594, %v2593
        %v2625 = vpack.c.b16 %v2596, %v2595
        %v2626 = vpack.c.b16 %v2598, %v2597
        %v2627 = vpack.c.b16 %v2600, %v2599
        %v2628 = vpack.c.b16 %v2602, %v2601
        %v2629 = vpack.c.b16 %v2604, %v2603
        %v2630 = vpack.c.b16 %v2606, %v2605
        %v2631 = vpack.c.b16 %v2608, %v2607
        %v2632 = vpack.c.b16 %v2610, %v2609
        %v2633 = vpack.c.b16 %v2612, %v2611
        %v2634 = vpack.c.b16 %v2614, %v2613
        %v2635 = vpack.c.b16 %v2616, %v2615
        %v2636 = vpack.c.b16 %v2618, %v2617
        %v2637 = vpack.c.b16 %v2620, %v2619
        %v2638 = vpack.c.b16 %v2622, %v2621
        %2655 = vmatpush.bf16.msra.mxu0 %v2630
        %2656 = vmatpush.bf16.msra.mxu0 %v2629
        %2657 = vmatpush.bf16.msra.mxu0 %v2628
        %2658 = vmatpush.bf16.msra.mxu0 %v2627
        %2659 = vmatpush.bf16.msra.mxu0 %v2626
        %2660 = vmatpush.bf16.msra.mxu0 %v2625
        %2661 = vmatpush.bf16.msra.mxu0 %v2624
        %2662 = vmatpush.bf16.msra.mxu0 %v2623
        %2663 = vmatmul.bf16.gmra.mxu0 %v1763
        %v2664 = vpop.f32.mrf.mxu0
        %v2665 = vadd.f32 %v2520, %v2664
        %v2666 = vpop.f32.mrf.mxu0
        %v2667 = vadd.f32 %v2522, %v2666
        %2668 = vmatmul.bf16.gmra.mxu0 %v1765
        %v2669 = vpop.f32.mrf.mxu0
        %v2670 = vadd.f32 %v2525, %v2669
        %v2671 = vpop.f32.mrf.mxu0
        %v2672 = vadd.f32 %v2527, %v2671
        %2673 = vmatmul.bf16.gmra.mxu0 %v1767
        %v2674 = vpop.f32.mrf.mxu0
        %v2675 = vadd.f32 %v2530, %v2674
        %v2676 = vpop.f32.mrf.mxu0
        %v2677 = vadd.f32 %v2532, %v2676
        %2678 = vmatmul.bf16.gmra.mxu0 %v1769
        %v2679 = vpop.f32.mrf.mxu0
        %v2680 = vadd.f32 %v2535, %v2679
        %v2681 = vpop.f32.mrf.mxu0
        %v2682 = vadd.f32 %v2537, %v2681
        %2683 = vmatmul.bf16.gmra.mxu0 %v1771
        %v2684 = vpop.f32.mrf.mxu0
        %v2685 = vadd.f32 %v2540, %v2684
        %v2686 = vpop.f32.mrf.mxu0
        %v2687 = vadd.f32 %v2542, %v2686
        %2688 = vmatmul.bf16.gmra.mxu0 %v1773
        %v2689 = vpop.f32.mrf.mxu0
        %v2690 = vadd.f32 %v2545, %v2689
        %v2691 = vpop.f32.mrf.mxu0
        %v2692 = vadd.f32 %v2547, %v2691
        %2693 = vmatmul.bf16.gmra.mxu0 %v1775
        %v2694 = vpop.f32.mrf.mxu0
        %v2695 = vadd.f32 %v2550, %v2694
        %v2696 = vpop.f32.mrf.mxu0
        %v2697 = vadd.f32 %v2552, %v2696
        %2698 = vmatmul.bf16.gmra.mxu0 %v1777
        %v2699 = vpop.f32.mrf.mxu0
        %v2700 = vadd.f32 %v2555, %v2699
        %v2701 = vpop.f32.mrf.mxu0
        %v2702 = vadd.f32 %v2557, %v2701
        %2703 = vdwg.mxu0
        %2704 = vmatpush.bf16.msra.mxu0 %v2638
        %2705 = vmatpush.bf16.msra.mxu0 %v2637
        %2706 = vmatpush.bf16.msra.mxu0 %v2636
        %2707 = vmatpush.bf16.msra.mxu0 %v2635
        %2708 = vmatpush.bf16.msra.mxu0 %v2634
        %2709 = vmatpush.bf16.msra.mxu0 %v2633
        %2710 = vmatpush.bf16.msra.mxu0 %v2632
        %2711 = vmatpush.bf16.msra.mxu0 %v2631
        %2712 = vmatmul.bf16.gmra.mxu0 %v1764
        %v2713 = vpop.f32.mrf.mxu0
        %v2714 = vadd.f32 %v2665, %v2713
        %v2715 = vpop.f32.mrf.mxu0
        %v2716 = vadd.f32 %v2667, %v2715
        %2717 = vmatmul.bf16.gmra.mxu0 %v1766
        %v2718 = vpop.f32.mrf.mxu0
        %v2719 = vadd.f32 %v2670, %v2718
        %v2720 = vpop.f32.mrf.mxu0
        %v2721 = vadd.f32 %v2672, %v2720
        %2722 = vmatmul.bf16.gmra.mxu0 %v1768
        %v2723 = vpop.f32.mrf.mxu0
        %v2724 = vadd.f32 %v2675, %v2723
        %v2725 = vpop.f32.mrf.mxu0
        %v2726 = vadd.f32 %v2677, %v2725
        %2727 = vmatmul.bf16.gmra.mxu0 %v1770
        %v2728 = vpop.f32.mrf.mxu0
        %v2729 = vadd.f32 %v2680, %v2728
        %v2730 = vpop.f32.mrf.mxu0
        %v2731 = vadd.f32 %v2682, %v2730
        %2732 = vmatmul.bf16.gmra.mxu0 %v1772
        %v2733 = vpop.f32.mrf.mxu0
        %v2734 = vadd.f32 %v2685, %v2733
        %v2735 = vpop.f32.mrf.mxu0
        %v2736 = vadd.f32 %v2687, %v2735
        %2737 = vmatmul.bf16.gmra.mxu0 %v1774
        %v2738 = vpop.f32.mrf.mxu0
        %v2739 = vadd.f32 %v2690, %v2738
        %v2740 = vpop.f32.mrf.mxu0
        %v2741 = vadd.f32 %v2692, %v2740
        %2742 = vmatmul.bf16.gmra.mxu0 %v1776
        %v2743 = vpop.f32.mrf.mxu0
        %v2744 = vadd.f32 %v2695, %v2743
        %v2745 = vpop.f32.mrf.mxu0
        %v2746 = vadd.f32 %v2697, %v2745
        %2747 = vmatmul.bf16.gmra.mxu0 %v1778
        %v2748 = vpop.f32.mrf.mxu0
        %v2749 = vadd.f32 %v2700, %v2748
        %v2750 = vpop.f32.mrf.mxu0
        %v2751 = vadd.f32 %v2702, %v2750
        %2752 = vdwg.mxu0
        %v2753 = vld [vmem:[%s11] sm:$0x1]
        %v2755 = vperm.slane %v2753, 0
        %v2757 = vadd.f32 %v2714, %v2755
        %v2758 = vadd.f32 %v2716, %v2755
        %v2759 = vadd.f32 %v2719, %v2755
        %v2760 = vadd.f32 %v2721, %v2755
        %v2761 = vadd.f32 %v2724, %v2755
        %v2762 = vadd.f32 %v2726, %v2755
        %v2763 = vadd.f32 %v2729, %v2755
        %v2764 = vadd.f32 %v2731, %v2755
        %v2765 = vadd.f32 %v2734, %v2755
        %v2766 = vadd.f32 %v2736, %v2755
        %v2767 = vadd.f32 %v2739, %v2755
        %v2768 = vadd.f32 %v2741, %v2755
        %v2769 = vadd.f32 %v2744, %v2755
        %v2770 = vadd.f32 %v2746, %v2755
        %v2771 = vadd.f32 %v2749, %v2755
        %v2772 = vadd.f32 %v2751, %v2755
        %vm2773 = vcmask 15360
        %2774 = vst.msk [vmem:[%s454] sm:$0xff] %vm2773, %v2757
        %2775 = vst.msk [vmem:[%s454 + $0x8] sm:$0xff] %vm2773, %v2758
        %2776 = vst.msk [vmem:[%s454 + $0x10] sm:$0xff] %vm2773, %v2759
        %2777 = vst.msk [vmem:[%s454 + $0x18] sm:$0xff] %vm2773, %v2760
        %2778 = vst.msk [vmem:[%s454 + $0x20] sm:$0xff] %vm2773, %v2761
        %2779 = vst.msk [vmem:[%s454 + $0x28] sm:$0xff] %vm2773, %v2762
        %2780 = vst.msk [vmem:[%s454 + $0x30] sm:$0xff] %vm2773, %v2763
        %2781 = vst.msk [vmem:[%s454 + $0x38] sm:$0xff] %vm2773, %v2764
        %2782 = vst.msk [vmem:[%s454 + $0x40] sm:$0xff] %vm2773, %v2765
        %2783 = vst.msk [vmem:[%s454 + $0x48] sm:$0xff] %vm2773, %v2766
        %2784 = vst.msk [vmem:[%s454 + $0x50] sm:$0xff] %vm2773, %v2767
        %2785 = vst.msk [vmem:[%s454 + $0x58] sm:$0xff] %vm2773, %v2768
        %2786 = vst.msk [vmem:[%s454 + $0x60] sm:$0xff] %vm2773, %v2769
        %2787 = vst.msk [vmem:[%s454 + $0x68] sm:$0xff] %vm2773, %v2770
        %2788 = vst.msk [vmem:[%s454 + $0x70] sm:$0xff] %vm2773, %v2771
        %2789 = vst.msk [vmem:[%s454 + $0x78] sm:$0xff] %vm2773, %v2772
        %s2790 = smul.u32 16, %s24
        %p2791 = scmp.lt.s32.totalorder %s2790, 31
        %s2792 = scalar_select %p2791, %s2790, 31
        %s2793 = smul.addr %s2792, 8
        %s2794 = scalar_lea.vmem %s12, %s2793
        // Predicated region
        $region73: #{tpu_custom_call.1} parent=67 // pred_check
          %p2795 = pneg %p304
        $region74: #{tpu_custom_call.1} parent=67 // pred_check_branch
          %2797 = sbr.rel (%p2795) target = $region76
        $region75: #{tpu_custom_call.1} parent=67 // pred_region
          %s2798 = smul.u32 16, %s24
        $region76: #{tpu_custom_call.1} parent=67 // pred_fallthru
          _
      $region68: #{tpu_custom_call.1} parent=5 // pred_fallthru
        _
      %p2799 = scmp.le.s32.totalorder 2, %s19
      // Predicated region
      $region77: #{tpu_custom_call.1} parent=5 // pred_check
        %p2800 = pneg %p2799
      $region78: #{tpu_custom_call.1} parent=5 // pred_check_branch
        %2802 = sbr.rel (%p2800) target = $region80
      $region79: #{tpu_custom_call.1} parent=5 // pred_region
        %s2803 = ssub.s32 %s19, 2
        // Predicated region
        $region81: #{tpu_custom_call.1} parent=79 // pred_check
          %p2804 = pneg %p310
        $region82: #{tpu_custom_call.1} parent=79 // pred_check_branch
          %2806 = sbr.rel (%p2804) target = $region84
        $region83: #{tpu_custom_call.1} parent=79 // pred_region
          %s2807 = smul.u32 16, %s25
          %p2808 = scmp.lt.s32.totalorder %s2807, 31
          %s2809 = scalar_select %p2808, %s2807, 31
          %s2810 = smul.addr %s2809, 8
          %s2811 = scalar_lea.vmem %s12, %s2810
        $region84: #{tpu_custom_call.1} parent=79 // pred_fallthru
          _
      $region80: #{tpu_custom_call.1} parent=5 // pred_fallthru
        _
    $region6: #{tpu_custom_call.1} parent=1 // loop_footer
      %s23 = sadd.s32 1, %s19
    $region7: #{tpu_custom_call.1} parent=1 // loop_footer_branch
      %18 = sbr.rel target = $region3
    $region8: #{tpu_custom_call.1} parent=1 // loop_exit
      _
    %2812 = vsyncpa [#allocation3], 1
    %s2813 = scalar_lea.sflag [#allocation3], 1
    %2814 = vsyncpa %s2813, 1

</llo_original>
